<compile_context>
chip_gen: v5e
topology: v5e:2x2
jax: 0.10.0
libtpu: 0.0.40
codegen_flags: <defaults>
</compile_context>

<pallas_src>
import jax
import jax.numpy as jnp
from jax.experimental import pallas as pl
from jax.experimental.pallas import tpu as pltpu

IN_DIM = 784
H1 = 256
H2 = 64
HIDDEN = 8            # self.hidden in the PyTorch module
MAX_TB = 1024         # batch tile cap (bf16 I/O): ~1.6 MB per activation tile


def _round_up(n, m):
    return ((n + m - 1) // m) * m


def _autoencoder_kernel(x_ref,
                        w1_ref, b1_ref, w2_ref, b2_ref, w3_ref, b3_ref,
                        w4_ref, b4_ref, w5_ref, b5_ref, w6_ref, b6_ref,
                        o_ref):
    # bf16 MXU operands, f32 accumulation; bias add / ReLU / sigmoid in f32.
    def dense(h_bf16, w_ref, b_ref):
        return jnp.dot(h_bf16, w_ref[...],
                       preferred_element_type=jnp.float32) + b_ref[...]

    def relu_bf16(a_f32):
        return jnp.maximum(a_f32, 0.0).astype(jnp.bfloat16)

    x = x_ref[...].astype(jnp.bfloat16)          # no-op when input is bf16

    # ---- encoder ----
    h = relu_bf16(dense(x, w1_ref, b1_ref))       # (TB, 256)
    h = relu_bf16(dense(h, w2_ref, b2_ref))       # (TB, 64)
    h = relu_bf16(dense(h, w3_ref, b3_ref))       # (TB, 8)

    # ---- decoder ----
    h = relu_bf16(dense(h, w4_ref, b4_ref))       # (TB, 64)
    h = relu_bf16(dense(h, w5_ref, b5_ref))       # (TB, 256)
    # Sigmoid only over the 784 real columns; f32 EUP (v5e-safe), bf16 store.
    o_ref[...] = jax.nn.sigmoid(dense(h, w6_ref, b6_ref)).astype(o_ref.dtype)


def _full_spec(shape):
    # Weights / biases: single block = whole array, same block for every grid
    # step (kept VMEM-resident by the pipeline).
    # NOTE: could add pipeline_mode=pl.Buffered(1) on v7x to skip the redundant
    # second weight buffer; skipped here for portability (negligible elsewhere).
    return pl.BlockSpec(shape, lambda i: (0,) * len(shape))


def prepare_params(params):
    """One-time weight prep: weights -> bf16, biases -> f32 row vectors."""
    prepared = {}
    for i in range(1, 7):
        prepared[f"w{i}"] = jnp.asarray(params[f"w{i}"], jnp.bfloat16)
        prepared[f"b{i}"] = jnp.asarray(params[f"b{i}"], jnp.float32).reshape(1, -1)
    return prepared


@jax.jit
def autoencoder_forward(x, params):
    """x: (B, 784), bf16 preferred (f32 also accepted); params: prepare_params() output."""
    B = x.shape[0]
    B8 = _round_up(B, 8)
    # Force >= 2 grid steps when the batch allows so the "parallel" batch axis
    # shards across both TensorCores on v7x (no cost on single-TC v5e/v6e).
    if B8 >= 16:
        TB = min(MAX_TB, _round_up(pl.cdiv(B8, 2), 8))
    else:
        TB = B8
    B_pad = _round_up(B8, TB)
    grid = (B_pad // TB,)

    # Batch-only padding (no feature padding); zero rows for B == 8 test case.
    if B_pad != B:
        x = jnp.pad(x, ((0, B_pad - B), (0, 0)))

    weights = [params[f"w{i}"] for i in range(1, 7)]
    biases = [params[f"b{i}"] for i in range(1, 7)]

    in_specs = [pl.BlockSpec((TB, IN_DIM), lambda i: (i, 0))]   # x tile
    operands = [x]
    for w, b in zip(weights, biases):
        in_specs += [_full_spec(w.shape), _full_spec(b.shape)]
        operands += [w, b]
    out_specs = pl.BlockSpec((TB, IN_DIM), lambda i: (i, 0))

    layer_dims = [(IN_DIM, H1), (H1, H2), (H2, HIDDEN),
                  (HIDDEN, H2), (H2, H1), (H1, IN_DIM)]
    flops = 2 * B_pad * sum(k * n for k, n in layer_dims)
    weight_bytes = sum(2 * k * n + 4 * n for k, n in layer_dims)  # bf16 W + f32 b
    act_bytes = (x.dtype.itemsize + 2) * B_pad * IN_DIM           # in + bf16 out
    cost = pl.CostEstimate(flops=flops,
                           transcendentals=B_pad * IN_DIM,        # sigmoid
                           bytes_accessed=act_bytes + weight_bytes)

    out = pl.pallas_call(
        _autoencoder_kernel,
        out_shape=jax.ShapeDtypeStruct((B_pad, IN_DIM), jnp.bfloat16),
        grid_spec=pltpu.PrefetchScalarGridSpec(
            num_scalar_prefetch=0,
            grid=grid,
            in_specs=in_specs,
            out_specs=out_specs,
        ),
        compiler_params=pltpu.CompilerParams(
            dimension_semantics=("parallel",),
            # Actual need at TB=1024 (bf16 I/O, double-buffered tiles + f32
            # intermediates + resident weights) is well under 20 MiB; 32 MiB
            # leaves headroom and fits v7x's 64 MiB physical VMEM.
            vmem_limit_bytes=32 * 1024 * 1024,
        ),
        cost_estimate=cost,
    )(*operands)

    return out if B_pad == B else out[:B]


def init_params(key):
    """Deterministic init mimicking nn.Linear default (U(-1/sqrt(fan_in), 1/sqrt(fan_in)))."""
    dims = [(IN_DIM, H1), (H1, H2), (H2, HIDDEN),        # encoder
            (HIDDEN, H2), (H2, H1), (H1, IN_DIM)]        # decoder
    params = {}
    keys = jax.random.split(key, 2 * len(dims))
    for idx, (fan_in, fan_out) in enumerate(dims):
        bound = 1.0 / jnp.sqrt(float(fan_in))
        # Stored as (in_dim, out_dim) so the kernel does x @ W + b (== x @ W_pt.T + b).
        w = jax.random.uniform(keys[2 * idx], (fan_in, fan_out),
                               minval=-bound, maxval=bound, dtype=jnp.float32)
        b = jax.random.uniform(keys[2 * idx + 1], (fan_out,),
                               minval=-bound, maxval=bound, dtype=jnp.float32)
        params[f"w{idx + 1}"] = w
        params[f"b{idx + 1}"] = b
    return params


def reference_forward(x, params):
    """Pure-JAX f32 reference for correctness checking."""
    h = jnp.maximum(x @ params["w1"] + params["b1"], 0.0)
    h = jnp.maximum(h @ params["w2"] + params["b2"], 0.0)
    h = jnp.maximum(h @ params["w3"] + params["b3"], 0.0)
    d = jnp.maximum(h @ params["w4"] + params["b4"], 0.0)
    d = jnp.maximum(d @ params["w5"] + params["b5"], 0.0)
    return jax.nn.sigmoid(d @ params["w6"] + params["b6"])


if __name__ == "__main__":
    key = jax.random.PRNGKey(0)
    pkey, xkey = jax.random.split(key)

    raw_params = init_params(pkey)
    params = prepare_params(raw_params)      # one-time bf16 weight prep

    B = 8
    x_f32 = jax.random.normal(xkey, (B, IN_DIM), dtype=jnp.float32)
    x = x_f32.astype(jnp.bfloat16)            # bf16 activation streaming end-to-end

    out = jax.block_until_ready(autoencoder_forward(x, params))

    ref = reference_forward(x.astype(jnp.float32), raw_params)
    assert out.shape == (B, IN_DIM)
    assert out.dtype == jnp.bfloat16
    # bf16 matmul operands / bf16 output with f32 accumulation: loose tolerance.
    assert jnp.allclose(out.astype(jnp.float32), ref, atol=2e-2, rtol=2e-2), \
        "mismatch vs reference"

    # TODO(synk): 'vae' branch (reparametrize with torch.randn_like) not implemented;
    # only the default type='simple' forward path is reproduced here.
    print("KERNEL_OK")
</pallas_src>

<mosaic_0001>
module attributes {stable_mosaic.version = 11 : i64} {
  func.func @_autoencoder_kernel(%arg0: i32, %arg1: memref<8x784xbf16, #tpu.memory_space<vmem>>, %arg2: memref<784x256xbf16, #tpu.memory_space<vmem>>, %arg3: memref<1x256xf32, #tpu.memory_space<vmem>>, %arg4: memref<256x64xbf16, #tpu.memory_space<vmem>>, %arg5: memref<1x64xf32, #tpu.memory_space<vmem>>, %arg6: memref<64x8xbf16, #tpu.memory_space<vmem>>, %arg7: memref<1x8xf32, #tpu.memory_space<vmem>>, %arg8: memref<8x64xbf16, #tpu.memory_space<vmem>>, %arg9: memref<1x64xf32, #tpu.memory_space<vmem>>, %arg10: memref<64x256xbf16, #tpu.memory_space<vmem>>, %arg11: memref<1x256xf32, #tpu.memory_space<vmem>>, %arg12: memref<256x784xbf16, #tpu.memory_space<vmem>>, %arg13: memref<1x784xf32, #tpu.memory_space<vmem>>, %arg14: memref<8x784xbf16, #tpu.memory_space<vmem>>) attributes {dimension_semantics = [#tpu.dimension_semantics<parallel>], iteration_bounds = array<i64: 1>, scalar_prefetch = 0 : i64, scratch_operands = 0 : i64, tpu.core_type = #tpu.core_type<tc>, window_params = [{transform_indices = @transform_0, window_bounds = array<i64: 8, 784>}, {pipeline_mode = #tpu.pipeline_mode<synchronous>, transform_indices = @transform_1, window_bounds = array<i64: 784, 256>}, {pipeline_mode = #tpu.pipeline_mode<synchronous>, transform_indices = @transform_2, window_bounds = array<i64: 1, 256>}, {pipeline_mode = #tpu.pipeline_mode<synchronous>, transform_indices = @transform_3, window_bounds = array<i64: 256, 64>}, {pipeline_mode = #tpu.pipeline_mode<synchronous>, transform_indices = @transform_4, window_bounds = array<i64: 1, 64>}, {pipeline_mode = #tpu.pipeline_mode<synchronous>, transform_indices = @transform_5, window_bounds = array<i64: 64, 8>}, {pipeline_mode = #tpu.pipeline_mode<synchronous>, transform_indices = @transform_6, window_bounds = array<i64: 1, 8>}, {pipeline_mode = #tpu.pipeline_mode<synchronous>, transform_indices = @transform_7, window_bounds = array<i64: 8, 64>}, {pipeline_mode = #tpu.pipeline_mode<synchronous>, transform_indices = @transform_8, window_bounds = array<i64: 1, 64>}, {pipeline_mode = #tpu.pipeline_mode<synchronous>, transform_indices = @transform_9, window_bounds = array<i64: 64, 256>}, {pipeline_mode = #tpu.pipeline_mode<synchronous>, transform_indices = @transform_10, window_bounds = array<i64: 1, 256>}, {pipeline_mode = #tpu.pipeline_mode<synchronous>, transform_indices = @transform_11, window_bounds = array<i64: 256, 784>}, {pipeline_mode = #tpu.pipeline_mode<synchronous>, transform_indices = @transform_12, window_bounds = array<i64: 1, 784>}, {transform_indices = @transform_13, window_bounds = array<i64: 8, 784>}]} {
    %c0 = arith.constant 0 : index
    %c0_0 = arith.constant 0 : index
    %0 = vector.load %arg1[%c0, %c0_0] : memref<8x784xbf16, #tpu.memory_space<vmem>>, vector<8x784xbf16>
    %c0_1 = arith.constant 0 : index
    %c0_2 = arith.constant 0 : index
    %1 = vector.load %arg2[%c0_1, %c0_2] : memref<784x256xbf16, #tpu.memory_space<vmem>>, vector<784x256xbf16>
    %cst = arith.constant dense<0.000000e+00> : vector<8x256xf32>
    %2 = tpu.matmul %0, %1, %cst {dimension_numbers = #tpu.dot_dimension_numbers<[1], [0], [0], [1], [0, 0, 1, 1], [], []>} : vector<8x784xbf16>, vector<784x256xbf16>, vector<8x256xf32> -> vector<8x256xf32>
    %c0_3 = arith.constant 0 : index
    %c0_4 = arith.constant 0 : index
    %3 = vector.load %arg3[%c0_3, %c0_4] : memref<1x256xf32, #tpu.memory_space<vmem>>, vector<1x256xf32>
    %4 = vector.broadcast %3 : vector<1x256xf32> to vector<8x256xf32>
    %5 = arith.addf %2, %4 : vector<8x256xf32>
    %cst_5 = arith.constant 0.000000e+00 : f32
    %6 = vector.broadcast %cst_5 : f32 to vector<8x256xf32>
    %7 = arith.maximumf %5, %6 : vector<8x256xf32>
    %8 = arith.truncf %7 : vector<8x256xf32> to vector<8x256xbf16>
    %c0_6 = arith.constant 0 : index
    %c0_7 = arith.constant 0 : index
    %9 = vector.load %arg4[%c0_6, %c0_7] : memref<256x64xbf16, #tpu.memory_space<vmem>>, vector<256x64xbf16>
    %cst_8 = arith.constant dense<0.000000e+00> : vector<8x64xf32>
    %10 = tpu.matmul %8, %9, %cst_8 {dimension_numbers = #tpu.dot_dimension_numbers<[1], [0], [0], [1], [0, 0, 1, 1], [], []>} : vector<8x256xbf16>, vector<256x64xbf16>, vector<8x64xf32> -> vector<8x64xf32>
    %c0_9 = arith.constant 0 : index
    %c0_10 = arith.constant 0 : index
    %11 = vector.load %arg5[%c0_9, %c0_10] : memref<1x64xf32, #tpu.memory_space<vmem>>, vector<1x64xf32>
    %12 = vector.broadcast %11 : vector<1x64xf32> to vector<8x64xf32>
    %13 = arith.addf %10, %12 : vector<8x64xf32>
    %cst_11 = arith.constant 0.000000e+00 : f32
    %14 = vector.broadcast %cst_11 : f32 to vector<8x64xf32>
    %15 = arith.maximumf %13, %14 : vector<8x64xf32>
    %16 = arith.truncf %15 : vector<8x64xf32> to vector<8x64xbf16>
    %c0_12 = arith.constant 0 : index
    %c0_13 = arith.constant 0 : index
    %17 = vector.load %arg6[%c0_12, %c0_13] : memref<64x8xbf16, #tpu.memory_space<vmem>>, vector<64x8xbf16>
    %cst_14 = arith.constant dense<0.000000e+00> : vector<8x8xf32>
    %18 = tpu.matmul %16, %17, %cst_14 {dimension_numbers = #tpu.dot_dimension_numbers<[1], [0], [0], [1], [0, 0, 1, 1], [], []>} : vector<8x64xbf16>, vector<64x8xbf16>, vector<8x8xf32> -> vector<8x8xf32>
    %c0_15 = arith.constant 0 : index
    %c0_16 = arith.constant 0 : index
    %19 = vector.load %arg7[%c0_15, %c0_16] : memref<1x8xf32, #tpu.memory_space<vmem>>, vector<1x8xf32>
    %20 = vector.broadcast %19 : vector<1x8xf32> to vector<8x8xf32>
    %21 = arith.addf %18, %20 : vector<8x8xf32>
    %cst_17 = arith.constant 0.000000e+00 : f32
    %22 = vector.broadcast %cst_17 : f32 to vector<8x8xf32>
    %23 = arith.maximumf %21, %22 : vector<8x8xf32>
    %24 = arith.truncf %23 : vector<8x8xf32> to vector<8x8xbf16>
    %c0_18 = arith.constant 0 : index
    %c0_19 = arith.constant 0 : index
    %25 = vector.load %arg8[%c0_18, %c0_19] : memref<8x64xbf16, #tpu.memory_space<vmem>>, vector<8x64xbf16>
    %cst_20 = arith.constant dense<0.000000e+00> : vector<8x64xf32>
    %26 = tpu.matmul %24, %25, %cst_20 {dimension_numbers = #tpu.dot_dimension_numbers<[1], [0], [0], [1], [0, 0, 1, 1], [], []>} : vector<8x8xbf16>, vector<8x64xbf16>, vector<8x64xf32> -> vector<8x64xf32>
    %c0_21 = arith.constant 0 : index
    %c0_22 = arith.constant 0 : index
    %27 = vector.load %arg9[%c0_21, %c0_22] : memref<1x64xf32, #tpu.memory_space<vmem>>, vector<1x64xf32>
    %28 = vector.broadcast %27 : vector<1x64xf32> to vector<8x64xf32>
    %29 = arith.addf %26, %28 : vector<8x64xf32>
    %cst_23 = arith.constant 0.000000e+00 : f32
    %30 = vector.broadcast %cst_23 : f32 to vector<8x64xf32>
    %31 = arith.maximumf %29, %30 : vector<8x64xf32>
    %32 = arith.truncf %31 : vector<8x64xf32> to vector<8x64xbf16>
    %c0_24 = arith.constant 0 : index
    %c0_25 = arith.constant 0 : index
    %33 = vector.load %arg10[%c0_24, %c0_25] : memref<64x256xbf16, #tpu.memory_space<vmem>>, vector<64x256xbf16>
    %cst_26 = arith.constant dense<0.000000e+00> : vector<8x256xf32>
    %34 = tpu.matmul %32, %33, %cst_26 {dimension_numbers = #tpu.dot_dimension_numbers<[1], [0], [0], [1], [0, 0, 1, 1], [], []>} : vector<8x64xbf16>, vector<64x256xbf16>, vector<8x256xf32> -> vector<8x256xf32>
    %c0_27 = arith.constant 0 : index
    %c0_28 = arith.constant 0 : index
    %35 = vector.load %arg11[%c0_27, %c0_28] : memref<1x256xf32, #tpu.memory_space<vmem>>, vector<1x256xf32>
    %36 = vector.broadcast %35 : vector<1x256xf32> to vector<8x256xf32>
    %37 = arith.addf %34, %36 : vector<8x256xf32>
    %cst_29 = arith.constant 0.000000e+00 : f32
    %38 = vector.broadcast %cst_29 : f32 to vector<8x256xf32>
    %39 = arith.maximumf %37, %38 : vector<8x256xf32>
    %40 = arith.truncf %39 : vector<8x256xf32> to vector<8x256xbf16>
    %c0_30 = arith.constant 0 : index
    %c0_31 = arith.constant 0 : index
    %41 = vector.load %arg12[%c0_30, %c0_31] : memref<256x784xbf16, #tpu.memory_space<vmem>>, vector<256x784xbf16>
    %cst_32 = arith.constant dense<0.000000e+00> : vector<8x784xf32>
    %42 = tpu.matmul %40, %41, %cst_32 {dimension_numbers = #tpu.dot_dimension_numbers<[1], [0], [0], [1], [0, 0, 1, 1], [], []>} : vector<8x256xbf16>, vector<256x784xbf16>, vector<8x784xf32> -> vector<8x784xf32>
    %c0_33 = arith.constant 0 : index
    %c0_34 = arith.constant 0 : index
    %43 = vector.load %arg13[%c0_33, %c0_34] : memref<1x784xf32, #tpu.memory_space<vmem>>, vector<1x784xf32>
    %44 = vector.broadcast %43 : vector<1x784xf32> to vector<8x784xf32>
    %45 = arith.addf %42, %44 : vector<8x784xf32>
    %46 = arith.negf %45 : vector<8x784xf32>
    %47 = math.exp %46 : vector<8x784xf32>
    %cst_35 = arith.constant 1.000000e+00 : f32
    %48 = vector.broadcast %cst_35 : f32 to vector<8x784xf32>
    %49 = arith.addf %48, %47 : vector<8x784xf32>
    %50 = arith.divf %48, %49 : vector<8x784xf32>
    %51 = arith.truncf %50 : vector<8x784xf32> to vector<8x784xbf16>
    %c0_36 = arith.constant 0 : index
    %c0_37 = arith.constant 0 : index
    %52 = vector.load %arg14[%c0_36, %c0_37] : memref<8x784xbf16, #tpu.memory_space<vmem>>, vector<8x784xbf16>
    tpu.vector_store %arg14[%c0_36, %c0_37], %51 {strides = array<i32>} : memref<8x784xbf16, #tpu.memory_space<vmem>>, vector<8x784xbf16>,
    return
  }
  func.func @transform_0(%arg0: i32) -> (i32, i32) {
    %c0_i32 = arith.constant 0 : i32
    %c0_i32_0 = arith.constant 0 : i32
    return %arg0, %c0_i32 : i32, i32
  }
  func.func @transform_1(%arg0: i32) -> (i32, i32) {
    %c0_i32 = arith.constant 0 : i32
    %c0_i32_0 = arith.constant 0 : i32
    %c0_i32_1 = arith.constant 0 : i32
    return %c0_i32, %c0_i32_0 : i32, i32
  }
  func.func @transform_2(%arg0: i32) -> (i32, i32) {
    %c0_i32 = arith.constant 0 : i32
    %c0_i32_0 = arith.constant 0 : i32
    %c0_i32_1 = arith.constant 0 : i32
    return %c0_i32, %c0_i32_0 : i32, i32
  }
  func.func @transform_3(%arg0: i32) -> (i32, i32) {
    %c0_i32 = arith.constant 0 : i32
    %c0_i32_0 = arith.constant 0 : i32
    %c0_i32_1 = arith.constant 0 : i32
    return %c0_i32, %c0_i32_0 : i32, i32
  }
  func.func @transform_4(%arg0: i32) -> (i32, i32) {
    %c0_i32 = arith.constant 0 : i32
    %c0_i32_0 = arith.constant 0 : i32
    %c0_i32_1 = arith.constant 0 : i32
    return %c0_i32, %c0_i32_0 : i32, i32
  }
  func.func @transform_5(%arg0: i32) -> (i32, i32) {
    %c0_i32 = arith.constant 0 : i32
    %c0_i32_0 = arith.constant 0 : i32
    %c0_i32_1 = arith.constant 0 : i32
    return %c0_i32, %c0_i32_0 : i32, i32
  }
  func.func @transform_6(%arg0: i32) -> (i32, i32) {
    %c0_i32 = arith.constant 0 : i32
    %c0_i32_0 = arith.constant 0 : i32
    %c0_i32_1 = arith.constant 0 : i32
    return %c0_i32, %c0_i32_0 : i32, i32
  }
  func.func @transform_7(%arg0: i32) -> (i32, i32) {
    %c0_i32 = arith.constant 0 : i32
    %c0_i32_0 = arith.constant 0 : i32
    %c0_i32_1 = arith.constant 0 : i32
    return %c0_i32, %c0_i32_0 : i32, i32
  }
  func.func @transform_8(%arg0: i32) -> (i32, i32) {
    %c0_i32 = arith.constant 0 : i32
    %c0_i32_0 = arith.constant 0 : i32
    %c0_i32_1 = arith.constant 0 : i32
    return %c0_i32, %c0_i32_0 : i32, i32
  }
  func.func @transform_9(%arg0: i32) -> (i32, i32) {
    %c0_i32 = arith.constant 0 : i32
    %c0_i32_0 = arith.constant 0 : i32
    %c0_i32_1 = arith.constant 0 : i32
    return %c0_i32, %c0_i32_0 : i32, i32
  }
  func.func @transform_10(%arg0: i32) -> (i32, i32) {
    %c0_i32 = arith.constant 0 : i32
    %c0_i32_0 = arith.constant 0 : i32
    %c0_i32_1 = arith.constant 0 : i32
    return %c0_i32, %c0_i32_0 : i32, i32
  }
  func.func @transform_11(%arg0: i32) -> (i32, i32) {
    %c0_i32 = arith.constant 0 : i32
    %c0_i32_0 = arith.constant 0 : i32
    %c0_i32_1 = arith.constant 0 : i32
    return %c0_i32, %c0_i32_0 : i32, i32
  }
  func.func @transform_12(%arg0: i32) -> (i32, i32) {
    %c0_i32 = arith.constant 0 : i32
    %c0_i32_0 = arith.constant 0 : i32
    %c0_i32_1 = arith.constant 0 : i32
    return %c0_i32, %c0_i32_0 : i32, i32
  }
  func.func @transform_13(%arg0: i32) -> (i32, i32) {
    %c0_i32 = arith.constant 0 : i32
    %c0_i32_0 = arith.constant 0 : i32
    return %arg0, %c0_i32 : i32, i32
  }
}

</mosaic_0001>

<llo_original>
// kernel: autoencoder_forward.1
$region0: #{autoencoder_forward.1}
  #allocation0 [shape = 'u32[]', space=smem, size = 0x4, offset = 0x4, fixed_abs, tag = 'smem constant byte address 0x4 - core index']
  #allocation1 [shape = 'u32[72,128]{1,0:T(1,128)}', space=vmem, size = 0x9000, scoped, tag = 'internal scratch']
  %s0 = inlined_call_operand.vmem [shape: bf16[8,784], index: 0, kind: input, shape index: {}]
  %s1 = inlined_call_operand.vmem [shape: bf16[784,256], index: 1, kind: input, shape index: {}]
  %s2 = inlined_call_operand.vmem [shape: f32[1,256], index: 2, kind: input, shape index: {}]
  %s3 = inlined_call_operand.vmem [shape: bf16[256,64], index: 3, kind: input, shape index: {}]
  %s4 = inlined_call_operand.vmem [shape: f32[1,64], index: 4, kind: input, shape index: {}]
  %s5 = inlined_call_operand.vmem [shape: bf16[64,8], index: 5, kind: input, shape index: {}]
  %s6 = inlined_call_operand.vmem [shape: f32[1,8], index: 6, kind: input, shape index: {}]
  %s7 = inlined_call_operand.vmem [shape: bf16[8,64], index: 7, kind: input, shape index: {}]
  %s8 = inlined_call_operand.vmem [shape: f32[1,64], index: 8, kind: input, shape index: {}]
  %s9 = inlined_call_operand.vmem [shape: bf16[64,256], index: 9, kind: input, shape index: {}]
  %s10 = inlined_call_operand.vmem [shape: f32[1,256], index: 10, kind: input, shape index: {}]
  %s11 = inlined_call_operand.vmem [shape: bf16[256,784], index: 11, kind: input, shape index: {}]
  %s12 = inlined_call_operand.vmem [shape: f32[1,784], index: 12, kind: input, shape index: {}]
  %s13 = inlined_call_operand.hbm [shape: bf16[8,784], index: 13, kind: output, shape index: {}]
  %s14 = sld [smem:[#allocation0]]
  $region62: #{autoencoder_forward.1} parent=0
    _
  %s16 = ssub.s32 1, %s14
  %s17 = scalar_select 0, %s16, %s14
  $region1: #{autoencoder_forward.1} parent=0
    #allocation2 [shape = 'u8[14336]{0}', space=vmem, size = 0x3800, scoped, tag = 'output window, operand 0, single buffered']
    #allocation3 [shape = 's32[1]{0}', space=sflag, size = 0x4, scoped, tag = 'scoped memory for autoencoder_forward.1']
    %18 = vsyncpa [#allocation3], 0
    // Predicated region
    $region2: #{autoencoder_forward.1} parent=1 // pred_check
      _
    $region3: #{autoencoder_forward.1} parent=1 // pred_check_branch
      %20 = sbr.rel (0) target = $region5
    $region4: #{autoencoder_forward.1} parent=1 // pred_region
      _
    $region5: #{autoencoder_forward.1} parent=1 // pred_fallthru
      _
    // Predicated region
    $region6: #{autoencoder_forward.1} parent=1 // pred_check
      _
    $region7: #{autoencoder_forward.1} parent=1 // pred_check_branch
      %22 = sbr.rel (0) target = $region9
    $region8: #{autoencoder_forward.1} parent=1 // pred_region
      _
    $region9: #{autoencoder_forward.1} parent=1 // pred_fallthru
      _
    // Predicated region
    $region10: #{autoencoder_forward.1} parent=1 // pred_check
      _
    $region11: #{autoencoder_forward.1} parent=1 // pred_check_branch
      %24 = sbr.rel (0) target = $region13
    $region12: #{autoencoder_forward.1} parent=1 // pred_region
      _
    $region13: #{autoencoder_forward.1} parent=1 // pred_fallthru
      _
    // Predicated region
    $region14: #{autoencoder_forward.1} parent=1 // pred_check
      _
    $region15: #{autoencoder_forward.1} parent=1 // pred_check_branch
      %26 = sbr.rel (0) target = $region17
    $region16: #{autoencoder_forward.1} parent=1 // pred_region
      _
    $region17: #{autoencoder_forward.1} parent=1 // pred_fallthru
      _
    // Predicated region
    $region18: #{autoencoder_forward.1} parent=1 // pred_check
      _
    $region19: #{autoencoder_forward.1} parent=1 // pred_check_branch
      %28 = sbr.rel (0) target = $region21
    $region20: #{autoencoder_forward.1} parent=1 // pred_region
      _
    $region21: #{autoencoder_forward.1} parent=1 // pred_fallthru
      _
    // Predicated region
    $region22: #{autoencoder_forward.1} parent=1 // pred_check
      _
    $region23: #{autoencoder_forward.1} parent=1 // pred_check_branch
      %30 = sbr.rel (0) target = $region25
    $region24: #{autoencoder_forward.1} parent=1 // pred_region
      _
    $region25: #{autoencoder_forward.1} parent=1 // pred_fallthru
      _
    // Predicated region
    $region26: #{autoencoder_forward.1} parent=1 // pred_check
      _
    $region27: #{autoencoder_forward.1} parent=1 // pred_check_branch
      %32 = sbr.rel (0) target = $region29
    $region28: #{autoencoder_forward.1} parent=1 // pred_region
      _
    $region29: #{autoencoder_forward.1} parent=1 // pred_fallthru
      _
    // Predicated region
    $region30: #{autoencoder_forward.1} parent=1 // pred_check
      _
    $region31: #{autoencoder_forward.1} parent=1 // pred_check_branch
      %34 = sbr.rel (0) target = $region33
    $region32: #{autoencoder_forward.1} parent=1 // pred_region
      _
    $region33: #{autoencoder_forward.1} parent=1 // pred_fallthru
      _
    // Predicated region
    $region34: #{autoencoder_forward.1} parent=1 // pred_check
      _
    $region35: #{autoencoder_forward.1} parent=1 // pred_check_branch
      %36 = sbr.rel (0) target = $region37
    $region36: #{autoencoder_forward.1} parent=1 // pred_region
      _
    $region37: #{autoencoder_forward.1} parent=1 // pred_fallthru
      _
    // Predicated region
    $region38: #{autoencoder_forward.1} parent=1 // pred_check
      _
    $region39: #{autoencoder_forward.1} parent=1 // pred_check_branch
      %38 = sbr.rel (0) target = $region41
    $region40: #{autoencoder_forward.1} parent=1 // pred_region
      _
    $region41: #{autoencoder_forward.1} parent=1 // pred_fallthru
      _
    // Predicated region
    $region42: #{autoencoder_forward.1} parent=1 // pred_check
      _
    $region43: #{autoencoder_forward.1} parent=1 // pred_check_branch
      %40 = sbr.rel (0) target = $region45
    $region44: #{autoencoder_forward.1} parent=1 // pred_region
      _
    $region45: #{autoencoder_forward.1} parent=1 // pred_fallthru
      _
    // Predicated region
    $region46: #{autoencoder_forward.1} parent=1 // pred_check
      _
    $region47: #{autoencoder_forward.1} parent=1 // pred_check_branch
      %42 = sbr.rel (0) target = $region49
    $region48: #{autoencoder_forward.1} parent=1 // pred_region
      _
    $region49: #{autoencoder_forward.1} parent=1 // pred_fallthru
      _
    // Predicated region
    $region50: #{autoencoder_forward.1} parent=1 // pred_check
      _
    $region51: #{autoencoder_forward.1} parent=1 // pred_check_branch
      %44 = sbr.rel (0) target = $region53
    $region52: #{autoencoder_forward.1} parent=1 // pred_region
      _
    $region53: #{autoencoder_forward.1} parent=1 // pred_fallthru
      _
    %v46 = vld [vmem:[%s0] sm:$0xff]
    %v47 = vld [vmem:[%s0 + $0x8] sm:$0xff]
    %v48 = vld [vmem:[%s0 + $0x10] sm:$0xff]
    %v49 = vld [vmem:[%s0 + $0x18] sm:$0xf]
    %v50 = vld [vmem:[%s1] sm:$0xff]
    %v51 = vld [vmem:[%s1 + $0x8] sm:$0xff]
    %v52 = vld [vmem:[%s1 + $0x10] sm:$0xff]
    %v53 = vld [vmem:[%s1 + $0x18] sm:$0xff]
    %v54 = vld [vmem:[%s1 + $0x20] sm:$0xff]
    %v55 = vld [vmem:[%s1 + $0x28] sm:$0xff]
    %v56 = vld [vmem:[%s1 + $0x30] sm:$0xff]
    %v57 = vld [vmem:[%s1 + $0x38] sm:$0xff]
    %v58 = vld [vmem:[%s1 + $0x40] sm:$0xff]
    %v59 = vld [vmem:[%s1 + $0x48] sm:$0xff]
    %v60 = vld [vmem:[%s1 + $0x50] sm:$0xff]
    %v61 = vld [vmem:[%s1 + $0x58] sm:$0xff]
    %v62 = vld [vmem:[%s1 + $0x60] sm:$0xff]
    %v63 = vld [vmem:[%s1 + $0x68] sm:$0xff]
    %v64 = vld [vmem:[%s1 + $0x70] sm:$0xff]
    %v65 = vld [vmem:[%s1 + $0x78] sm:$0xff]
    %v66 = vld [vmem:[%s1 + $0x80] sm:$0xff]
    %v67 = vld [vmem:[%s1 + $0x88] sm:$0xff]
    %v68 = vld [vmem:[%s1 + $0x90] sm:$0xff]
    %v69 = vld [vmem:[%s1 + $0x98] sm:$0xff]
    %v70 = vld [vmem:[%s1 + $0xa0] sm:$0xff]
    %v71 = vld [vmem:[%s1 + $0xa8] sm:$0xff]
    %v72 = vld [vmem:[%s1 + $0xb0] sm:$0xff]
    %v73 = vld [vmem:[%s1 + $0xb8] sm:$0xff]
    %v74 = vld [vmem:[%s1 + $0xc0] sm:$0xff]
    %v75 = vld [vmem:[%s1 + $0xc8] sm:$0xff]
    %v76 = vld [vmem:[%s1 + $0xd0] sm:$0xff]
    %v77 = vld [vmem:[%s1 + $0xd8] sm:$0xff]
    %v78 = vld [vmem:[%s1 + $0xe0] sm:$0xff]
    %v79 = vld [vmem:[%s1 + $0xe8] sm:$0xff]
    %v80 = vld [vmem:[%s1 + $0xf0] sm:$0xff]
    %v81 = vld [vmem:[%s1 + $0xf8] sm:$0xff]
    %v82 = vld [vmem:[%s1 + $0x100] sm:$0xff]
    %v83 = vld [vmem:[%s1 + $0x108] sm:$0xff]
    %v84 = vld [vmem:[%s1 + $0x110] sm:$0xff]
    %v85 = vld [vmem:[%s1 + $0x118] sm:$0xff]
    %v86 = vld [vmem:[%s1 + $0x120] sm:$0xff]
    %v87 = vld [vmem:[%s1 + $0x128] sm:$0xff]
    %v88 = vld [vmem:[%s1 + $0x130] sm:$0xff]
    %v89 = vld [vmem:[%s1 + $0x138] sm:$0xff]
    %v90 = vld [vmem:[%s1 + $0x140] sm:$0xff]
    %v91 = vld [vmem:[%s1 + $0x148] sm:$0xff]
    %v92 = vld [vmem:[%s1 + $0x150] sm:$0xff]
    %v93 = vld [vmem:[%s1 + $0x158] sm:$0xff]
    %v94 = vld [vmem:[%s1 + $0x160] sm:$0xff]
    %v95 = vld [vmem:[%s1 + $0x168] sm:$0xff]
    %v96 = vld [vmem:[%s1 + $0x170] sm:$0xff]
    %v97 = vld [vmem:[%s1 + $0x178] sm:$0xff]
    %v98 = vld [vmem:[%s1 + $0x180] sm:$0xff]
    %v99 = vld [vmem:[%s1 + $0x188] sm:$0xff]
    %v100 = vld [vmem:[%s1 + $0x190] sm:$0xff]
    %v101 = vld [vmem:[%s1 + $0x198] sm:$0xff]
    %v102 = vld [vmem:[%s1 + $0x1a0] sm:$0xff]
    %v103 = vld [vmem:[%s1 + $0x1a8] sm:$0xff]
    %v104 = vld [vmem:[%s1 + $0x1b0] sm:$0xff]
    %v105 = vld [vmem:[%s1 + $0x1b8] sm:$0xff]
    %v106 = vld [vmem:[%s1 + $0x1c0] sm:$0xff]
    %v107 = vld [vmem:[%s1 + $0x1c8] sm:$0xff]
    %v108 = vld [vmem:[%s1 + $0x1d0] sm:$0xff]
    %v109 = vld [vmem:[%s1 + $0x1d8] sm:$0xff]
    %v110 = vld [vmem:[%s1 + $0x1e0] sm:$0xff]
    %v111 = vld [vmem:[%s1 + $0x1e8] sm:$0xff]
    %v112 = vld [vmem:[%s1 + $0x1f0] sm:$0xff]
    %v113 = vld [vmem:[%s1 + $0x1f8] sm:$0xff]
    %v114 = vld [vmem:[%s1 + $0x200] sm:$0xff]
    %v115 = vld [vmem:[%s1 + $0x208] sm:$0xff]
    %v116 = vld [vmem:[%s1 + $0x210] sm:$0xff]
    %v117 = vld [vmem:[%s1 + $0x218] sm:$0xff]
    %v118 = vld [vmem:[%s1 + $0x220] sm:$0xff]
    %v119 = vld [vmem:[%s1 + $0x228] sm:$0xff]
    %v120 = vld [vmem:[%s1 + $0x230] sm:$0xff]
    %v121 = vld [vmem:[%s1 + $0x238] sm:$0xff]
    %v122 = vld [vmem:[%s1 + $0x240] sm:$0xff]
    %v123 = vld [vmem:[%s1 + $0x248] sm:$0xff]
    %v124 = vld [vmem:[%s1 + $0x250] sm:$0xff]
    %v125 = vld [vmem:[%s1 + $0x258] sm:$0xff]
    %v126 = vld [vmem:[%s1 + $0x260] sm:$0xff]
    %v127 = vld [vmem:[%s1 + $0x268] sm:$0xff]
    %v128 = vld [vmem:[%s1 + $0x270] sm:$0xff]
    %v129 = vld [vmem:[%s1 + $0x278] sm:$0xff]
    %v130 = vld [vmem:[%s1 + $0x280] sm:$0xff]
    %v131 = vld [vmem:[%s1 + $0x288] sm:$0xff]
    %v132 = vld [vmem:[%s1 + $0x290] sm:$0xff]
    %v133 = vld [vmem:[%s1 + $0x298] sm:$0xff]
    %v134 = vld [vmem:[%s1 + $0x2a0] sm:$0xff]
    %v135 = vld [vmem:[%s1 + $0x2a8] sm:$0xff]
    %v136 = vld [vmem:[%s1 + $0x2b0] sm:$0xff]
    %v137 = vld [vmem:[%s1 + $0x2b8] sm:$0xff]
    %v138 = vld [vmem:[%s1 + $0x2c0] sm:$0xff]
    %v139 = vld [vmem:[%s1 + $0x2c8] sm:$0xff]
    %v140 = vld [vmem:[%s1 + $0x2d0] sm:$0xff]
    %v141 = vld [vmem:[%s1 + $0x2d8] sm:$0xff]
    %v142 = vld [vmem:[%s1 + $0x2e0] sm:$0xff]
    %v143 = vld [vmem:[%s1 + $0x2e8] sm:$0xff]
    %v144 = vld [vmem:[%s1 + $0x2f0] sm:$0xff]
    %v145 = vld [vmem:[%s1 + $0x2f8] sm:$0xff]
    %v146 = vld [vmem:[%s1 + $0x300] sm:$0xff]
    %v147 = vld [vmem:[%s1 + $0x308] sm:$0xff]
    %v148 = vld [vmem:[%s2] sm:$0x3]
    %v150 = vperm.slane %v148, 0
    %v151 = vperm.slane %v148, 1
    %v158 = vunpack.c.l.b16 %v46
    %v159 = vunpack.c.h.b16 %v46
    %v160 = vunpack.c.l.b16 %v47
    %v161 = vunpack.c.h.b16 %v47
    %v162 = vunpack.c.l.b16 %v48
    %v163 = vunpack.c.h.b16 %v48
    %v164 = vunpack.c.l.b16 %v49
    %v165 = vpack.c.b16 %v158, %v158
    %v166 = vpack.c.b16 %v159, %v159
    %v167 = vpack.c.b16 %v160, %v160
    %v168 = vpack.c.b16 %v161, %v161
    %v169 = vpack.c.b16 %v162, %v162
    %v170 = vpack.c.b16 %v163, %v163
    %v171 = vpack.c.b16 %v164, %v164
    %v276 = vunpack.c.l.b16 %v50
    %v277 = vunpack.c.h.b16 %v50
    %v278 = vunpack.c.l.b16 %v51
    %v279 = vunpack.c.h.b16 %v51
    %v280 = vunpack.c.l.b16 %v52
    %v281 = vunpack.c.h.b16 %v52
    %v282 = vunpack.c.l.b16 %v53
    %v283 = vunpack.c.h.b16 %v53
    %v284 = vunpack.c.l.b16 %v54
    %v285 = vunpack.c.h.b16 %v54
    %v286 = vunpack.c.l.b16 %v55
    %v287 = vunpack.c.h.b16 %v55
    %v288 = vunpack.c.l.b16 %v56
    %v289 = vunpack.c.h.b16 %v56
    %v290 = vunpack.c.l.b16 %v57
    %v291 = vunpack.c.h.b16 %v57
    %v292 = vunpack.c.l.b16 %v58
    %v293 = vunpack.c.h.b16 %v58
    %v294 = vunpack.c.l.b16 %v59
    %v295 = vunpack.c.h.b16 %v59
    %v296 = vunpack.c.l.b16 %v60
    %v297 = vunpack.c.h.b16 %v60
    %v298 = vunpack.c.l.b16 %v61
    %v299 = vunpack.c.h.b16 %v61
    %v300 = vunpack.c.l.b16 %v62
    %v301 = vunpack.c.h.b16 %v62
    %v302 = vunpack.c.l.b16 %v63
    %v303 = vunpack.c.h.b16 %v63
    %v304 = vunpack.c.l.b16 %v64
    %v305 = vunpack.c.h.b16 %v64
    %v306 = vunpack.c.l.b16 %v65
    %v307 = vunpack.c.h.b16 %v65
    %v308 = vunpack.c.l.b16 %v66
    %v309 = vunpack.c.h.b16 %v66
    %v310 = vunpack.c.l.b16 %v67
    %v311 = vunpack.c.h.b16 %v67
    %v312 = vunpack.c.l.b16 %v68
    %v313 = vunpack.c.h.b16 %v68
    %v314 = vunpack.c.l.b16 %v69
    %v315 = vunpack.c.h.b16 %v69
    %v316 = vunpack.c.l.b16 %v70
    %v317 = vunpack.c.h.b16 %v70
    %v318 = vunpack.c.l.b16 %v71
    %v319 = vunpack.c.h.b16 %v71
    %v320 = vunpack.c.l.b16 %v72
    %v321 = vunpack.c.h.b16 %v72
    %v322 = vunpack.c.l.b16 %v73
    %v323 = vunpack.c.h.b16 %v73
    %v324 = vunpack.c.l.b16 %v74
    %v325 = vunpack.c.h.b16 %v74
    %v326 = vunpack.c.l.b16 %v75
    %v327 = vunpack.c.h.b16 %v75
    %v328 = vunpack.c.l.b16 %v76
    %v329 = vunpack.c.h.b16 %v76
    %v330 = vunpack.c.l.b16 %v77
    %v331 = vunpack.c.h.b16 %v77
    %v332 = vunpack.c.l.b16 %v78
    %v333 = vunpack.c.h.b16 %v78
    %v334 = vunpack.c.l.b16 %v79
    %v335 = vunpack.c.h.b16 %v79
    %v336 = vunpack.c.l.b16 %v80
    %v337 = vunpack.c.h.b16 %v80
    %v338 = vunpack.c.l.b16 %v81
    %v339 = vunpack.c.h.b16 %v81
    %v340 = vunpack.c.l.b16 %v82
    %v341 = vunpack.c.h.b16 %v82
    %v342 = vunpack.c.l.b16 %v83
    %v343 = vunpack.c.h.b16 %v83
    %v344 = vunpack.c.l.b16 %v84
    %v345 = vunpack.c.h.b16 %v84
    %v346 = vunpack.c.l.b16 %v85
    %v347 = vunpack.c.h.b16 %v85
    %v348 = vunpack.c.l.b16 %v86
    %v349 = vunpack.c.h.b16 %v86
    %v350 = vunpack.c.l.b16 %v87
    %v351 = vunpack.c.h.b16 %v87
    %v352 = vunpack.c.l.b16 %v88
    %v353 = vunpack.c.h.b16 %v88
    %v354 = vunpack.c.l.b16 %v89
    %v355 = vunpack.c.h.b16 %v89
    %v356 = vunpack.c.l.b16 %v90
    %v357 = vunpack.c.h.b16 %v90
    %v358 = vunpack.c.l.b16 %v91
    %v359 = vunpack.c.h.b16 %v91
    %v360 = vunpack.c.l.b16 %v92
    %v361 = vunpack.c.h.b16 %v92
    %v362 = vunpack.c.l.b16 %v93
    %v363 = vunpack.c.h.b16 %v93
    %v364 = vunpack.c.l.b16 %v94
    %v365 = vunpack.c.h.b16 %v94
    %v366 = vunpack.c.l.b16 %v95
    %v367 = vunpack.c.h.b16 %v95
    %v368 = vunpack.c.l.b16 %v96
    %v369 = vunpack.c.h.b16 %v96
    %v370 = vunpack.c.l.b16 %v97
    %v371 = vunpack.c.h.b16 %v97
    %v372 = vunpack.c.l.b16 %v98
    %v373 = vunpack.c.h.b16 %v98
    %v374 = vunpack.c.l.b16 %v99
    %v375 = vunpack.c.h.b16 %v99
    %v376 = vunpack.c.l.b16 %v100
    %v377 = vunpack.c.h.b16 %v100
    %v378 = vunpack.c.l.b16 %v101
    %v379 = vunpack.c.h.b16 %v101
    %v380 = vunpack.c.l.b16 %v102
    %v381 = vunpack.c.h.b16 %v102
    %v382 = vunpack.c.l.b16 %v103
    %v383 = vunpack.c.h.b16 %v103
    %v384 = vunpack.c.l.b16 %v104
    %v385 = vunpack.c.h.b16 %v104
    %v386 = vunpack.c.l.b16 %v105
    %v387 = vunpack.c.h.b16 %v105
    %v388 = vunpack.c.l.b16 %v106
    %v389 = vunpack.c.h.b16 %v106
    %v390 = vunpack.c.l.b16 %v107
    %v391 = vunpack.c.h.b16 %v107
    %v392 = vunpack.c.l.b16 %v108
    %v393 = vunpack.c.h.b16 %v108
    %v394 = vunpack.c.l.b16 %v109
    %v395 = vunpack.c.h.b16 %v109
    %v396 = vunpack.c.l.b16 %v110
    %v397 = vunpack.c.h.b16 %v110
    %v398 = vunpack.c.l.b16 %v111
    %v399 = vunpack.c.h.b16 %v111
    %v400 = vunpack.c.l.b16 %v112
    %v401 = vunpack.c.h.b16 %v112
    %v402 = vunpack.c.l.b16 %v113
    %v403 = vunpack.c.h.b16 %v113
    %v404 = vunpack.c.l.b16 %v114
    %v405 = vunpack.c.h.b16 %v114
    %v406 = vunpack.c.l.b16 %v115
    %v407 = vunpack.c.h.b16 %v115
    %v408 = vunpack.c.l.b16 %v116
    %v409 = vunpack.c.h.b16 %v116
    %v410 = vunpack.c.l.b16 %v117
    %v411 = vunpack.c.h.b16 %v117
    %v412 = vunpack.c.l.b16 %v118
    %v413 = vunpack.c.h.b16 %v118
    %v414 = vunpack.c.l.b16 %v119
    %v415 = vunpack.c.h.b16 %v119
    %v416 = vunpack.c.l.b16 %v120
    %v417 = vunpack.c.h.b16 %v120
    %v418 = vunpack.c.l.b16 %v121
    %v419 = vunpack.c.h.b16 %v121
    %v420 = vunpack.c.l.b16 %v122
    %v421 = vunpack.c.h.b16 %v122
    %v422 = vunpack.c.l.b16 %v123
    %v423 = vunpack.c.h.b16 %v123
    %v424 = vunpack.c.l.b16 %v124
    %v425 = vunpack.c.h.b16 %v124
    %v426 = vunpack.c.l.b16 %v125
    %v427 = vunpack.c.h.b16 %v125
    %v428 = vunpack.c.l.b16 %v126
    %v429 = vunpack.c.h.b16 %v126
    %v430 = vunpack.c.l.b16 %v127
    %v431 = vunpack.c.h.b16 %v127
    %v432 = vunpack.c.l.b16 %v128
    %v433 = vunpack.c.h.b16 %v128
    %v434 = vunpack.c.l.b16 %v129
    %v435 = vunpack.c.h.b16 %v129
    %v436 = vunpack.c.l.b16 %v130
    %v437 = vunpack.c.h.b16 %v130
    %v438 = vunpack.c.l.b16 %v131
    %v439 = vunpack.c.h.b16 %v131
    %v440 = vunpack.c.l.b16 %v132
    %v441 = vunpack.c.h.b16 %v132
    %v442 = vunpack.c.l.b16 %v133
    %v443 = vunpack.c.h.b16 %v133
    %v444 = vunpack.c.l.b16 %v134
    %v445 = vunpack.c.h.b16 %v134
    %v446 = vunpack.c.l.b16 %v135
    %v447 = vunpack.c.h.b16 %v135
    %v448 = vunpack.c.l.b16 %v136
    %v449 = vunpack.c.h.b16 %v136
    %v450 = vunpack.c.l.b16 %v137
    %v451 = vunpack.c.h.b16 %v137
    %v452 = vunpack.c.l.b16 %v138
    %v453 = vunpack.c.h.b16 %v138
    %v454 = vunpack.c.l.b16 %v139
    %v455 = vunpack.c.h.b16 %v139
    %v456 = vunpack.c.l.b16 %v140
    %v457 = vunpack.c.h.b16 %v140
    %v458 = vunpack.c.l.b16 %v141
    %v459 = vunpack.c.h.b16 %v141
    %v460 = vunpack.c.l.b16 %v142
    %v461 = vunpack.c.h.b16 %v142
    %v462 = vunpack.c.l.b16 %v143
    %v463 = vunpack.c.h.b16 %v143
    %v464 = vunpack.c.l.b16 %v144
    %v465 = vunpack.c.h.b16 %v144
    %v466 = vunpack.c.l.b16 %v145
    %v467 = vunpack.c.h.b16 %v145
    %v468 = vunpack.c.l.b16 %v146
    %v469 = vunpack.c.h.b16 %v146
    %v470 = vunpack.c.l.b16 %v147
    %v471 = vunpack.c.h.b16 %v147
    %v472 = vpack.c.b16 %v278, %v276
    %v473 = vpack.c.b16 %v279, %v277
    %v474 = vpack.c.b16 %v282, %v280
    %v475 = vpack.c.b16 %v283, %v281
    %v476 = vpack.c.b16 %v286, %v284
    %v477 = vpack.c.b16 %v287, %v285
    %v478 = vpack.c.b16 %v290, %v288
    %v479 = vpack.c.b16 %v291, %v289
    %v480 = vpack.c.b16 %v294, %v292
    %v481 = vpack.c.b16 %v295, %v293
    %v482 = vpack.c.b16 %v298, %v296
    %v483 = vpack.c.b16 %v299, %v297
    %v484 = vpack.c.b16 %v302, %v300
    %v485 = vpack.c.b16 %v303, %v301
    %v486 = vpack.c.b16 %v306, %v304
    %v487 = vpack.c.b16 %v307, %v305
    %v488 = vpack.c.b16 %v310, %v308
    %v489 = vpack.c.b16 %v311, %v309
    %v490 = vpack.c.b16 %v314, %v312
    %v491 = vpack.c.b16 %v315, %v313
    %v492 = vpack.c.b16 %v318, %v316
    %v493 = vpack.c.b16 %v319, %v317
    %v494 = vpack.c.b16 %v322, %v320
    %v495 = vpack.c.b16 %v323, %v321
    %v496 = vpack.c.b16 %v326, %v324
    %v497 = vpack.c.b16 %v327, %v325
    %v498 = vpack.c.b16 %v330, %v328
    %v499 = vpack.c.b16 %v331, %v329
    %v500 = vpack.c.b16 %v334, %v332
    %v501 = vpack.c.b16 %v335, %v333
    %v502 = vpack.c.b16 %v338, %v336
    %v503 = vpack.c.b16 %v339, %v337
    %v504 = vpack.c.b16 %v342, %v340
    %v505 = vpack.c.b16 %v343, %v341
    %v506 = vpack.c.b16 %v346, %v344
    %v507 = vpack.c.b16 %v347, %v345
    %v508 = vpack.c.b16 %v350, %v348
    %v509 = vpack.c.b16 %v351, %v349
    %v510 = vpack.c.b16 %v354, %v352
    %v511 = vpack.c.b16 %v355, %v353
    %v512 = vpack.c.b16 %v358, %v356
    %v513 = vpack.c.b16 %v359, %v357
    %v514 = vpack.c.b16 %v362, %v360
    %v515 = vpack.c.b16 %v363, %v361
    %v516 = vpack.c.b16 %v366, %v364
    %v517 = vpack.c.b16 %v367, %v365
    %v518 = vpack.c.b16 %v370, %v368
    %v519 = vpack.c.b16 %v371, %v369
    %v520 = vpack.c.b16 %v374, %v372
    %v521 = vpack.c.b16 %v375, %v373
    %v522 = vpack.c.b16 %v378, %v376
    %v523 = vpack.c.b16 %v379, %v377
    %v524 = vpack.c.b16 %v382, %v380
    %v525 = vpack.c.b16 %v383, %v381
    %v526 = vpack.c.b16 %v386, %v384
    %v527 = vpack.c.b16 %v387, %v385
    %v528 = vpack.c.b16 %v390, %v388
    %v529 = vpack.c.b16 %v391, %v389
    %v530 = vpack.c.b16 %v394, %v392
    %v531 = vpack.c.b16 %v395, %v393
    %v532 = vpack.c.b16 %v398, %v396
    %v533 = vpack.c.b16 %v399, %v397
    %v534 = vpack.c.b16 %v402, %v400
    %v535 = vpack.c.b16 %v403, %v401
    %v536 = vpack.c.b16 %v406, %v404
    %v537 = vpack.c.b16 %v407, %v405
    %v538 = vpack.c.b16 %v410, %v408
    %v539 = vpack.c.b16 %v411, %v409
    %v540 = vpack.c.b16 %v414, %v412
    %v541 = vpack.c.b16 %v415, %v413
    %v542 = vpack.c.b16 %v418, %v416
    %v543 = vpack.c.b16 %v419, %v417
    %v544 = vpack.c.b16 %v422, %v420
    %v545 = vpack.c.b16 %v423, %v421
    %v546 = vpack.c.b16 %v426, %v424
    %v547 = vpack.c.b16 %v427, %v425
    %v548 = vpack.c.b16 %v430, %v428
    %v549 = vpack.c.b16 %v431, %v429
    %v550 = vpack.c.b16 %v434, %v432
    %v551 = vpack.c.b16 %v435, %v433
    %v552 = vpack.c.b16 %v438, %v436
    %v553 = vpack.c.b16 %v439, %v437
    %v554 = vpack.c.b16 %v442, %v440
    %v555 = vpack.c.b16 %v443, %v441
    %v556 = vpack.c.b16 %v446, %v444
    %v557 = vpack.c.b16 %v447, %v445
    %v558 = vpack.c.b16 %v450, %v448
    %v559 = vpack.c.b16 %v451, %v449
    %v560 = vpack.c.b16 %v454, %v452
    %v561 = vpack.c.b16 %v455, %v453
    %v562 = vpack.c.b16 %v458, %v456
    %v563 = vpack.c.b16 %v459, %v457
    %v564 = vpack.c.b16 %v462, %v460
    %v565 = vpack.c.b16 %v463, %v461
    %v566 = vpack.c.b16 %v466, %v464
    %v567 = vpack.c.b16 %v467, %v465
    %v568 = vpack.c.b16 %v470, %v468
    %v569 = vpack.c.b16 %v471, %v469
    %vm668 = vcmask 130048
    %v670 = vsel %vm668, %v171, 0
    %672 = vmatpush.bf16.msra.mxu0 %v486
    %673 = vmatpush.bf16.msra.mxu0 %v484
    %674 = vmatpush.bf16.msra.mxu0 %v482
    %675 = vmatpush.bf16.msra.mxu0 %v480
    %676 = vmatpush.bf16.msra.mxu0 %v478
    %677 = vmatpush.bf16.msra.mxu0 %v476
    %678 = vmatpush.bf16.msra.mxu0 %v474
    %679 = vmatpush.bf16.msra.mxu0 %v472
    %680 = vmatmul.bf16.gmra.mxu0 %v165
    %v681 = vpop.f32.mrf.mxu0
    %v682 = vadd.f32 %v150, %v681
    %v683 = vpop.f32.mrf.mxu0
    %684 = vdwg.mxu0
    %685 = vmatpush.bf16.msra.mxu0 %v502
    %686 = vmatpush.bf16.msra.mxu0 %v500
    %687 = vmatpush.bf16.msra.mxu0 %v498
    %688 = vmatpush.bf16.msra.mxu0 %v496
    %689 = vmatpush.bf16.msra.mxu0 %v494
    %690 = vmatpush.bf16.msra.mxu0 %v492
    %691 = vmatpush.bf16.msra.mxu0 %v490
    %692 = vmatpush.bf16.msra.mxu0 %v488
    %693 = vmatmul.bf16.gmra.mxu0 %v166
    %v694 = vpop.f32.mrf.mxu0
    %v695 = vadd.f32 %v682, %v694
    %v696 = vpop.f32.mrf.mxu0
    %697 = vdwg.mxu0
    %698 = vmatpush.bf16.msra.mxu0 %v518
    %699 = vmatpush.bf16.msra.mxu0 %v516
    %700 = vmatpush.bf16.msra.mxu0 %v514
    %701 = vmatpush.bf16.msra.mxu0 %v512
    %702 = vmatpush.bf16.msra.mxu0 %v510
    %703 = vmatpush.bf16.msra.mxu0 %v508
    %704 = vmatpush.bf16.msra.mxu0 %v506
    %705 = vmatpush.bf16.msra.mxu0 %v504
    %706 = vmatmul.bf16.gmra.mxu0 %v167
    %v707 = vpop.f32.mrf.mxu0
    %v708 = vadd.f32 %v695, %v707
    %v709 = vpop.f32.mrf.mxu0
    %710 = vdwg.mxu0
    %711 = vmatpush.bf16.msra.mxu0 %v534
    %712 = vmatpush.bf16.msra.mxu0 %v532
    %713 = vmatpush.bf16.msra.mxu0 %v530
    %714 = vmatpush.bf16.msra.mxu0 %v528
    %715 = vmatpush.bf16.msra.mxu0 %v526
    %716 = vmatpush.bf16.msra.mxu0 %v524
    %717 = vmatpush.bf16.msra.mxu0 %v522
    %718 = vmatpush.bf16.msra.mxu0 %v520
    %719 = vmatmul.bf16.gmra.mxu0 %v168
    %v720 = vpop.f32.mrf.mxu0
    %v721 = vadd.f32 %v708, %v720
    %v722 = vpop.f32.mrf.mxu0
    %723 = vdwg.mxu0
    %724 = vmatpush.bf16.msra.mxu0 %v550
    %725 = vmatpush.bf16.msra.mxu0 %v548
    %726 = vmatpush.bf16.msra.mxu0 %v546
    %727 = vmatpush.bf16.msra.mxu0 %v544
    %728 = vmatpush.bf16.msra.mxu0 %v542
    %729 = vmatpush.bf16.msra.mxu0 %v540
    %730 = vmatpush.bf16.msra.mxu0 %v538
    %731 = vmatpush.bf16.msra.mxu0 %v536
    %732 = vmatmul.bf16.gmra.mxu0 %v169
    %v733 = vpop.f32.mrf.mxu0
    %v734 = vadd.f32 %v721, %v733
    %v735 = vpop.f32.mrf.mxu0
    %736 = vdwg.mxu0
    %737 = vmatpush.bf16.msra.mxu0 %v566
    %738 = vmatpush.bf16.msra.mxu0 %v564
    %739 = vmatpush.bf16.msra.mxu0 %v562
    %740 = vmatpush.bf16.msra.mxu0 %v560
    %741 = vmatpush.bf16.msra.mxu0 %v558
    %742 = vmatpush.bf16.msra.mxu0 %v556
    %743 = vmatpush.bf16.msra.mxu0 %v554
    %744 = vmatpush.bf16.msra.mxu0 %v552
    %745 = vmatmul.bf16.gmra.mxu0 %v170
    %v746 = vpop.f32.mrf.mxu0
    %v747 = vadd.f32 %v734, %v746
    %v748 = vpop.f32.mrf.mxu0
    %749 = vdwg.mxu0
    %750 = vmatpush.bf16.msra.mxu0 0
    %751 = vmatpush.bf16.msra.mxu0 0
    %752 = vmatpush.bf16.msra.mxu0 0
    %753 = vmatpush.bf16.msra.mxu0 0
    %754 = vmatpush.bf16.msra.mxu0 0
    %755 = vmatpush.bf16.msra.mxu0 0
    %756 = vmatpush.bf16.msra.mxu0 0
    %757 = vmatpush.bf16.msra.mxu0 %v568
    %758 = vmatmul.bf16.gmra.mxu0 %v670
    %v759 = vpop.f32.mrf.mxu0
    %v760 = vadd.f32 %v747, %v759
    %v761 = vpop.f32.mrf.mxu0
    %762 = vdwg.mxu0
    %763 = vmatpush.bf16.msra.mxu0 %v487
    %764 = vmatpush.bf16.msra.mxu0 %v485
    %765 = vmatpush.bf16.msra.mxu0 %v483
    %766 = vmatpush.bf16.msra.mxu0 %v481
    %767 = vmatpush.bf16.msra.mxu0 %v479
    %768 = vmatpush.bf16.msra.mxu0 %v477
    %769 = vmatpush.bf16.msra.mxu0 %v475
    %770 = vmatpush.bf16.msra.mxu0 %v473
    %771 = vmatmul.bf16.gmra.mxu0 %v165
    %v772 = vpop.f32.mrf.mxu0
    %v773 = vadd.f32 %v151, %v772
    %v774 = vpop.f32.mrf.mxu0
    %775 = vdwg.mxu0
    %776 = vmatpush.bf16.msra.mxu0 %v503
    %777 = vmatpush.bf16.msra.mxu0 %v501
    %778 = vmatpush.bf16.msra.mxu0 %v499
    %779 = vmatpush.bf16.msra.mxu0 %v497
    %780 = vmatpush.bf16.msra.mxu0 %v495
    %781 = vmatpush.bf16.msra.mxu0 %v493
    %782 = vmatpush.bf16.msra.mxu0 %v491
    %783 = vmatpush.bf16.msra.mxu0 %v489
    %784 = vmatmul.bf16.gmra.mxu0 %v166
    %v785 = vpop.f32.mrf.mxu0
    %v786 = vadd.f32 %v773, %v785
    %v787 = vpop.f32.mrf.mxu0
    %788 = vdwg.mxu0
    %789 = vmatpush.bf16.msra.mxu0 %v519
    %790 = vmatpush.bf16.msra.mxu0 %v517
    %791 = vmatpush.bf16.msra.mxu0 %v515
    %792 = vmatpush.bf16.msra.mxu0 %v513
    %793 = vmatpush.bf16.msra.mxu0 %v511
    %794 = vmatpush.bf16.msra.mxu0 %v509
    %795 = vmatpush.bf16.msra.mxu0 %v507
    %796 = vmatpush.bf16.msra.mxu0 %v505
    %797 = vmatmul.bf16.gmra.mxu0 %v167
    %v798 = vpop.f32.mrf.mxu0
    %v799 = vadd.f32 %v786, %v798
    %v800 = vpop.f32.mrf.mxu0
    %801 = vdwg.mxu0
    %802 = vmatpush.bf16.msra.mxu0 %v535
    %803 = vmatpush.bf16.msra.mxu0 %v533
    %804 = vmatpush.bf16.msra.mxu0 %v531
    %805 = vmatpush.bf16.msra.mxu0 %v529
    %806 = vmatpush.bf16.msra.mxu0 %v527
    %807 = vmatpush.bf16.msra.mxu0 %v525
    %808 = vmatpush.bf16.msra.mxu0 %v523
    %809 = vmatpush.bf16.msra.mxu0 %v521
    %810 = vmatmul.bf16.gmra.mxu0 %v168
    %v811 = vpop.f32.mrf.mxu0
    %v812 = vadd.f32 %v799, %v811
    %v813 = vpop.f32.mrf.mxu0
    %814 = vdwg.mxu0
    %815 = vmatpush.bf16.msra.mxu0 %v551
    %816 = vmatpush.bf16.msra.mxu0 %v549
    %817 = vmatpush.bf16.msra.mxu0 %v547
    %818 = vmatpush.bf16.msra.mxu0 %v545
    %819 = vmatpush.bf16.msra.mxu0 %v543
    %820 = vmatpush.bf16.msra.mxu0 %v541
    %821 = vmatpush.bf16.msra.mxu0 %v539
    %822 = vmatpush.bf16.msra.mxu0 %v537
    %823 = vmatmul.bf16.gmra.mxu0 %v169
    %v824 = vpop.f32.mrf.mxu0
    %v825 = vadd.f32 %v812, %v824
    %v826 = vpop.f32.mrf.mxu0
    %827 = vdwg.mxu0
    %828 = vmatpush.bf16.msra.mxu0 %v567
    %829 = vmatpush.bf16.msra.mxu0 %v565
    %830 = vmatpush.bf16.msra.mxu0 %v563
    %831 = vmatpush.bf16.msra.mxu0 %v561
    %832 = vmatpush.bf16.msra.mxu0 %v559
    %833 = vmatpush.bf16.msra.mxu0 %v557
    %834 = vmatpush.bf16.msra.mxu0 %v555
    %835 = vmatpush.bf16.msra.mxu0 %v553
    %836 = vmatmul.bf16.gmra.mxu0 %v170
    %v837 = vpop.f32.mrf.mxu0
    %v838 = vadd.f32 %v825, %v837
    %v839 = vpop.f32.mrf.mxu0
    %840 = vdwg.mxu0
    %841 = vmatpush.bf16.msra.mxu0 0
    %842 = vmatpush.bf16.msra.mxu0 0
    %843 = vmatpush.bf16.msra.mxu0 0
    %844 = vmatpush.bf16.msra.mxu0 0
    %845 = vmatpush.bf16.msra.mxu0 0
    %846 = vmatpush.bf16.msra.mxu0 0
    %847 = vmatpush.bf16.msra.mxu0 0
    %848 = vmatpush.bf16.msra.mxu0 %v569
    %849 = vmatmul.bf16.gmra.mxu0 %v670
    %v850 = vpop.f32.mrf.mxu0
    %v851 = vadd.f32 %v838, %v850
    %v852 = vpop.f32.mrf.mxu0
    %853 = vdwg.mxu0
    %v854 = vmax.f32 %v760, 0.0
    %v855 = vmax.f32 %v851, 0.0
    %v856 = vpack.c.bf16 %v854, %v854
    %v857 = vpack.c.bf16 %v855, %v855
    %v858 = vld [vmem:[%s3] sm:$0xf]
    %v859 = vld [vmem:[%s3 + $0x4] sm:$0xf]
    %v860 = vld [vmem:[%s3 + $0x8] sm:$0xf]
    %v861 = vld [vmem:[%s3 + $0xc] sm:$0xf]
    %v862 = vld [vmem:[%s3 + $0x10] sm:$0xf]
    %v863 = vld [vmem:[%s3 + $0x14] sm:$0xf]
    %v864 = vld [vmem:[%s3 + $0x18] sm:$0xf]
    %v865 = vld [vmem:[%s3 + $0x1c] sm:$0xf]
    %v866 = vld [vmem:[%s3 + $0x20] sm:$0xf]
    %v867 = vld [vmem:[%s3 + $0x24] sm:$0xf]
    %v868 = vld [vmem:[%s3 + $0x28] sm:$0xf]
    %v869 = vld [vmem:[%s3 + $0x2c] sm:$0xf]
    %v870 = vld [vmem:[%s3 + $0x30] sm:$0xf]
    %v871 = vld [vmem:[%s3 + $0x34] sm:$0xf]
    %v872 = vld [vmem:[%s3 + $0x38] sm:$0xf]
    %v873 = vld [vmem:[%s3 + $0x3c] sm:$0xf]
    %v874 = vld [vmem:[%s3 + $0x40] sm:$0xf]
    %v875 = vld [vmem:[%s3 + $0x44] sm:$0xf]
    %v876 = vld [vmem:[%s3 + $0x48] sm:$0xf]
    %v877 = vld [vmem:[%s3 + $0x4c] sm:$0xf]
    %v878 = vld [vmem:[%s3 + $0x50] sm:$0xf]
    %v879 = vld [vmem:[%s3 + $0x54] sm:$0xf]
    %v880 = vld [vmem:[%s3 + $0x58] sm:$0xf]
    %v881 = vld [vmem:[%s3 + $0x5c] sm:$0xf]
    %v882 = vld [vmem:[%s3 + $0x60] sm:$0xf]
    %v883 = vld [vmem:[%s3 + $0x64] sm:$0xf]
    %v884 = vld [vmem:[%s3 + $0x68] sm:$0xf]
    %v885 = vld [vmem:[%s3 + $0x6c] sm:$0xf]
    %v886 = vld [vmem:[%s3 + $0x70] sm:$0xf]
    %v887 = vld [vmem:[%s3 + $0x74] sm:$0xf]
    %v888 = vld [vmem:[%s3 + $0x78] sm:$0xf]
    %v889 = vld [vmem:[%s3 + $0x7c] sm:$0xf]
    %v890 = vld [vmem:[%s4] sm:$0x1]
    %v892 = vperm.slane %v890, 0
    %v926 = vunpack.c.l.b16 %v858
    %v927 = vunpack.c.l.b16 %v859
    %v928 = vunpack.c.l.b16 %v860
    %v929 = vunpack.c.l.b16 %v861
    %v930 = vunpack.c.l.b16 %v862
    %v931 = vunpack.c.l.b16 %v863
    %v932 = vunpack.c.l.b16 %v864
    %v933 = vunpack.c.l.b16 %v865
    %v934 = vunpack.c.l.b16 %v866
    %v935 = vunpack.c.l.b16 %v867
    %v936 = vunpack.c.l.b16 %v868
    %v937 = vunpack.c.l.b16 %v869
    %v938 = vunpack.c.l.b16 %v870
    %v939 = vunpack.c.l.b16 %v871
    %v940 = vunpack.c.l.b16 %v872
    %v941 = vunpack.c.l.b16 %v873
    %v942 = vunpack.c.l.b16 %v874
    %v943 = vunpack.c.l.b16 %v875
    %v944 = vunpack.c.l.b16 %v876
    %v945 = vunpack.c.l.b16 %v877
    %v946 = vunpack.c.l.b16 %v878
    %v947 = vunpack.c.l.b16 %v879
    %v948 = vunpack.c.l.b16 %v880
    %v949 = vunpack.c.l.b16 %v881
    %v950 = vunpack.c.l.b16 %v882
    %v951 = vunpack.c.l.b16 %v883
    %v952 = vunpack.c.l.b16 %v884
    %v953 = vunpack.c.l.b16 %v885
    %v954 = vunpack.c.l.b16 %v886
    %v955 = vunpack.c.l.b16 %v887
    %v956 = vunpack.c.l.b16 %v888
    %v957 = vunpack.c.l.b16 %v889
    %v958 = vpack.c.b16 %v927, %v926
    %v959 = vpack.c.b16 %v929, %v928
    %v960 = vpack.c.b16 %v931, %v930
    %v961 = vpack.c.b16 %v933, %v932
    %v962 = vpack.c.b16 %v935, %v934
    %v963 = vpack.c.b16 %v937, %v936
    %v964 = vpack.c.b16 %v939, %v938
    %v965 = vpack.c.b16 %v941, %v940
    %v966 = vpack.c.b16 %v943, %v942
    %v967 = vpack.c.b16 %v945, %v944
    %v968 = vpack.c.b16 %v947, %v946
    %v969 = vpack.c.b16 %v949, %v948
    %v970 = vpack.c.b16 %v951, %v950
    %v971 = vpack.c.b16 %v953, %v952
    %v972 = vpack.c.b16 %v955, %v954
    %v973 = vpack.c.b16 %v957, %v956
    %990 = vmatpush.bf16.msra.mxu0 %v965
    %991 = vmatpush.bf16.msra.mxu0 %v964
    %992 = vmatpush.bf16.msra.mxu0 %v963
    %993 = vmatpush.bf16.msra.mxu0 %v962
    %994 = vmatpush.bf16.msra.mxu0 %v961
    %995 = vmatpush.bf16.msra.mxu0 %v960
    %996 = vmatpush.bf16.msra.mxu0 %v959
    %997 = vmatpush.bf16.msra.mxu0 %v958
    %998 = vmatmul.bf16.gmra.mxu0 %v856
    %v999 = vpop.f32.mrf.mxu0
    %v1000 = vadd.f32 %v892, %v999
    %v1001 = vpop.f32.mrf.mxu0
    %1002 = vdwg.mxu0
    %1003 = vmatpush.bf16.msra.mxu0 %v973
    %1004 = vmatpush.bf16.msra.mxu0 %v972
    %1005 = vmatpush.bf16.msra.mxu0 %v971
    %1006 = vmatpush.bf16.msra.mxu0 %v970
    %1007 = vmatpush.bf16.msra.mxu0 %v969
    %1008 = vmatpush.bf16.msra.mxu0 %v968
    %1009 = vmatpush.bf16.msra.mxu0 %v967
    %1010 = vmatpush.bf16.msra.mxu0 %v966
    %1011 = vmatmul.bf16.gmra.mxu0 %v857
    %v1012 = vpop.f32.mrf.mxu0
    %v1013 = vadd.f32 %v1000, %v1012
    %v1014 = vpop.f32.mrf.mxu0
    %1015 = vdwg.mxu0
    %v1016 = vmax.f32 %v1013, 0.0
    %v1017 = vpack.c.bf16 %v1016, %v1016
    %v1018 = vld [vmem:[%s5] sm:$0xf]
    %v1019 = vld [vmem:[%s5 + $0x4] sm:$0xf]
    %v1020 = vld [vmem:[%s5 + $0x8] sm:$0xf]
    %v1021 = vld [vmem:[%s5 + $0xc] sm:$0xf]
    %v1022 = vld [vmem:[%s5 + $0x10] sm:$0xf]
    %v1023 = vld [vmem:[%s5 + $0x14] sm:$0xf]
    %v1024 = vld [vmem:[%s5 + $0x18] sm:$0xf]
    %v1025 = vld [vmem:[%s5 + $0x1c] sm:$0xf]
    %v1026 = vld [vmem:[%s6] sm:$0x1]
    %v1028 = vperm.slane %v1026, 0
    %v1038 = vunpack.c.l.b16 %v1018
    %v1039 = vunpack.c.l.b16 %v1019
    %v1040 = vunpack.c.l.b16 %v1020
    %v1041 = vunpack.c.l.b16 %v1021
    %v1042 = vunpack.c.l.b16 %v1022
    %v1043 = vunpack.c.l.b16 %v1023
    %v1044 = vunpack.c.l.b16 %v1024
    %v1045 = vunpack.c.l.b16 %v1025
    %v1046 = vpack.c.b16 %v1039, %v1038
    %v1047 = vpack.c.b16 %v1041, %v1040
    %v1048 = vpack.c.b16 %v1043, %v1042
    %v1049 = vpack.c.b16 %v1045, %v1044
    %vm1054 = vcmask 523264
    %v1056 = vsel %vm1054, %v1017, 0
    %1058 = vmatpush.bf16.msra.mxu0 0
    %1059 = vmatpush.bf16.msra.mxu0 0
    %1060 = vmatpush.bf16.msra.mxu0 0
    %1061 = vmatpush.bf16.msra.mxu0 0
    %1062 = vmatpush.bf16.msra.mxu0 %v1049
    %1063 = vmatpush.bf16.msra.mxu0 %v1048
    %1064 = vmatpush.bf16.msra.mxu0 %v1047
    %1065 = vmatpush.bf16.msra.mxu0 %v1046
    %1066 = vmatmul.bf16.gmra.mxu0 %v1056
    %v1067 = vpop.f32.mrf.mxu0
    %v1068 = vadd.f32 %v1028, %v1067
    %v1069 = vpop.f32.mrf.mxu0
    %1070 = vdwg.mxu0
    %v1071 = vmax.f32 %v1068, 0.0
    %v1072 = vpack.c.bf16 %v1071, %v1071
    %v1073 = vld [vmem:[%s7] sm:$0xf]
    %v1074 = vld [vmem:[%s8] sm:$0x1]
    %v1076 = vperm.slane %v1074, 0
    %vm1078 = vcmask 64512
    %v1080 = vsel %vm1078, %v1072, 0
    %vm1082 = vcmask 1043456
    %v1084 = vsel %vm1082, %v1073, 0
    %1086 = vmatpush.bf16.msra.mxu0 0
    %1087 = vmatpush.bf16.msra.mxu0 0
    %1088 = vmatpush.bf16.msra.mxu0 0
    %1089 = vmatpush.bf16.msra.mxu0 0
    %1090 = vmatpush.bf16.msra.mxu0 0
    %1091 = vmatpush.bf16.msra.mxu0 0
    %1092 = vmatpush.bf16.msra.mxu0 0
    %1093 = vmatpush.bf16.msra.mxu0 %v1084
    %1094 = vmatmul.bf16.gmra.mxu0 %v1080
    %v1095 = vpop.f32.mrf.mxu0
    %v1096 = vadd.f32 %v1076, %v1095
    %v1097 = vpop.f32.mrf.mxu0
    %1098 = vdwg.mxu0
    %v1099 = vmax.f32 %v1096, 0.0
    %v1100 = vpack.c.bf16 %v1099, %v1099
    %v1101 = vld [vmem:[%s9] sm:$0xff]
    %v1102 = vld [vmem:[%s9 + $0x8] sm:$0xff]
    %v1103 = vld [vmem:[%s9 + $0x10] sm:$0xff]
    %v1104 = vld [vmem:[%s9 + $0x18] sm:$0xff]
    %v1105 = vld [vmem:[%s9 + $0x20] sm:$0xff]
    %v1106 = vld [vmem:[%s9 + $0x28] sm:$0xff]
    %v1107 = vld [vmem:[%s9 + $0x30] sm:$0xff]
    %v1108 = vld [vmem:[%s9 + $0x38] sm:$0xff]
    %v1109 = vld [vmem:[%s10] sm:$0x3]
    %v1111 = vperm.slane %v1109, 0
    %v1112 = vperm.slane %v1109, 1
    %v1123 = vunpack.c.l.b16 %v1101
    %v1124 = vunpack.c.h.b16 %v1101
    %v1125 = vunpack.c.l.b16 %v1102
    %v1126 = vunpack.c.h.b16 %v1102
    %v1127 = vunpack.c.l.b16 %v1103
    %v1128 = vunpack.c.h.b16 %v1103
    %v1129 = vunpack.c.l.b16 %v1104
    %v1130 = vunpack.c.h.b16 %v1104
    %v1131 = vunpack.c.l.b16 %v1105
    %v1132 = vunpack.c.h.b16 %v1105
    %v1133 = vunpack.c.l.b16 %v1106
    %v1134 = vunpack.c.h.b16 %v1106
    %v1135 = vunpack.c.l.b16 %v1107
    %v1136 = vunpack.c.h.b16 %v1107
    %v1137 = vunpack.c.l.b16 %v1108
    %v1138 = vunpack.c.h.b16 %v1108
    %v1139 = vpack.c.b16 %v1125, %v1123
    %v1140 = vpack.c.b16 %v1126, %v1124
    %v1141 = vpack.c.b16 %v1129, %v1127
    %v1142 = vpack.c.b16 %v1130, %v1128
    %v1143 = vpack.c.b16 %v1133, %v1131
    %v1144 = vpack.c.b16 %v1134, %v1132
    %v1145 = vpack.c.b16 %v1137, %v1135
    %v1146 = vpack.c.b16 %v1138, %v1136
    %v1156 = vsel %vm1054, %v1100, 0
    %1158 = vmatpush.bf16.msra.mxu0 0
    %1159 = vmatpush.bf16.msra.mxu0 0
    %1160 = vmatpush.bf16.msra.mxu0 0
    %1161 = vmatpush.bf16.msra.mxu0 0
    %1162 = vmatpush.bf16.msra.mxu0 %v1145
    %1163 = vmatpush.bf16.msra.mxu0 %v1143
    %1164 = vmatpush.bf16.msra.mxu0 %v1141
    %1165 = vmatpush.bf16.msra.mxu0 %v1139
    %1166 = vmatmul.bf16.gmra.mxu0 %v1156
    %v1167 = vpop.f32.mrf.mxu0
    %v1168 = vadd.f32 %v1111, %v1167
    %v1169 = vpop.f32.mrf.mxu0
    %1170 = vdwg.mxu0
    %1171 = vmatpush.bf16.msra.mxu0 0
    %1172 = vmatpush.bf16.msra.mxu0 0
    %1173 = vmatpush.bf16.msra.mxu0 0
    %1174 = vmatpush.bf16.msra.mxu0 0
    %1175 = vmatpush.bf16.msra.mxu0 %v1146
    %1176 = vmatpush.bf16.msra.mxu0 %v1144
    %1177 = vmatpush.bf16.msra.mxu0 %v1142
    %1178 = vmatpush.bf16.msra.mxu0 %v1140
    %1179 = vmatmul.bf16.gmra.mxu0 %v1156
    %v1180 = vpop.f32.mrf.mxu0
    %v1181 = vadd.f32 %v1112, %v1180
    %v1182 = vpop.f32.mrf.mxu0
    %1183 = vdwg.mxu0
    %v1184 = vmax.f32 %v1168, 0.0
    %v1185 = vmax.f32 %v1181, 0.0
    %v1186 = vpack.c.bf16 %v1184, %v1184
    %v1187 = vpack.c.bf16 %v1185, %v1185
    %v1188 = vld [vmem:[%s11] sm:$0xff]
    %v1189 = vld [vmem:[%s11 + $0x8] sm:$0xff]
    %v1190 = vld [vmem:[%s11 + $0x10] sm:$0xff]
    %v1191 = vld [vmem:[%s11 + $0x18] sm:$0xf]
    %v1192 = vld [vmem:[%s11 + $0x1c] sm:$0xff]
    %v1193 = vld [vmem:[%s11 + $0x24] sm:$0xff]
    %v1194 = vld [vmem:[%s11 + $0x2c] sm:$0xff]
    %v1195 = vld [vmem:[%s11 + $0x34] sm:$0xf]
    %v1196 = vld [vmem:[%s11 + $0x38] sm:$0xff]
    %v1197 = vld [vmem:[%s11 + $0x40] sm:$0xff]
    %v1198 = vld [vmem:[%s11 + $0x48] sm:$0xff]
    %v1199 = vld [vmem:[%s11 + $0x50] sm:$0xf]
    %v1200 = vld [vmem:[%s11 + $0x54] sm:$0xff]
    %v1201 = vld [vmem:[%s11 + $0x5c] sm:$0xff]
    %v1202 = vld [vmem:[%s11 + $0x64] sm:$0xff]
    %v1203 = vld [vmem:[%s11 + $0x6c] sm:$0xf]
    %v1204 = vld [vmem:[%s11 + $0x70] sm:$0xff]
    %v1205 = vld [vmem:[%s11 + $0x78] sm:$0xff]
    %v1206 = vld [vmem:[%s11 + $0x80] sm:$0xff]
    %v1207 = vld [vmem:[%s11 + $0x88] sm:$0xf]
    %v1208 = vld [vmem:[%s11 + $0x8c] sm:$0xff]
    %v1209 = vld [vmem:[%s11 + $0x94] sm:$0xff]
    %v1210 = vld [vmem:[%s11 + $0x9c] sm:$0xff]
    %v1211 = vld [vmem:[%s11 + $0xa4] sm:$0xf]
    %v1212 = vld [vmem:[%s11 + $0xa8] sm:$0xff]
    %v1213 = vld [vmem:[%s11 + $0xb0] sm:$0xff]
    %v1214 = vld [vmem:[%s11 + $0xb8] sm:$0xff]
    %v1215 = vld [vmem:[%s11 + $0xc0] sm:$0xf]
    %v1216 = vld [vmem:[%s11 + $0xc4] sm:$0xff]
    %v1217 = vld [vmem:[%s11 + $0xcc] sm:$0xff]
    %v1218 = vld [vmem:[%s11 + $0xd4] sm:$0xff]
    %v1219 = vld [vmem:[%s11 + $0xdc] sm:$0xf]
    %v1220 = vld [vmem:[%s11 + $0xe0] sm:$0xff]
    %v1221 = vld [vmem:[%s11 + $0xe8] sm:$0xff]
    %v1222 = vld [vmem:[%s11 + $0xf0] sm:$0xff]
    %v1223 = vld [vmem:[%s11 + $0xf8] sm:$0xf]
    %v1224 = vld [vmem:[%s11 + $0xfc] sm:$0xff]
    %v1225 = vld [vmem:[%s11 + $0x104] sm:$0xff]
    %v1226 = vld [vmem:[%s11 + $0x10c] sm:$0xff]
    %v1227 = vld [vmem:[%s11 + $0x114] sm:$0xf]
    %v1228 = vld [vmem:[%s11 + $0x118] sm:$0xff]
    %v1229 = vld [vmem:[%s11 + $0x120] sm:$0xff]
    %v1230 = vld [vmem:[%s11 + $0x128] sm:$0xff]
    %v1231 = vld [vmem:[%s11 + $0x130] sm:$0xf]
    %v1232 = vld [vmem:[%s11 + $0x134] sm:$0xff]
    %v1233 = vld [vmem:[%s11 + $0x13c] sm:$0xff]
    %v1234 = vld [vmem:[%s11 + $0x144] sm:$0xff]
    %v1235 = vld [vmem:[%s11 + $0x14c] sm:$0xf]
    %v1236 = vld [vmem:[%s11 + $0x150] sm:$0xff]
    %v1237 = vld [vmem:[%s11 + $0x158] sm:$0xff]
    %v1238 = vld [vmem:[%s11 + $0x160] sm:$0xff]
    %v1239 = vld [vmem:[%s11 + $0x168] sm:$0xf]
    %v1240 = vld [vmem:[%s11 + $0x16c] sm:$0xff]
    %v1241 = vld [vmem:[%s11 + $0x174] sm:$0xff]
    %v1242 = vld [vmem:[%s11 + $0x17c] sm:$0xff]
    %v1243 = vld [vmem:[%s11 + $0x184] sm:$0xf]
    %v1244 = vld [vmem:[%s11 + $0x188] sm:$0xff]
    %v1245 = vld [vmem:[%s11 + $0x190] sm:$0xff]
    %v1246 = vld [vmem:[%s11 + $0x198] sm:$0xff]
    %v1247 = vld [vmem:[%s11 + $0x1a0] sm:$0xf]
    %v1248 = vld [vmem:[%s11 + $0x1a4] sm:$0xff]
    %v1249 = vld [vmem:[%s11 + $0x1ac] sm:$0xff]
    %v1250 = vld [vmem:[%s11 + $0x1b4] sm:$0xff]
    %v1251 = vld [vmem:[%s11 + $0x1bc] sm:$0xf]
    %v1252 = vld [vmem:[%s11 + $0x1c0] sm:$0xff]
    %v1253 = vld [vmem:[%s11 + $0x1c8] sm:$0xff]
    %v1254 = vld [vmem:[%s11 + $0x1d0] sm:$0xff]
    %v1255 = vld [vmem:[%s11 + $0x1d8] sm:$0xf]
    %v1256 = vld [vmem:[%s11 + $0x1dc] sm:$0xff]
    %v1257 = vld [vmem:[%s11 + $0x1e4] sm:$0xff]
    %v1258 = vld [vmem:[%s11 + $0x1ec] sm:$0xff]
    %v1259 = vld [vmem:[%s11 + $0x1f4] sm:$0xf]
    %v1260 = vld [vmem:[%s11 + $0x1f8] sm:$0xff]
    %v1261 = vld [vmem:[%s11 + $0x200] sm:$0xff]
    %v1262 = vld [vmem:[%s11 + $0x208] sm:$0xff]
    %v1263 = vld [vmem:[%s11 + $0x210] sm:$0xf]
    %v1264 = vld [vmem:[%s11 + $0x214] sm:$0xff]
    %v1265 = vld [vmem:[%s11 + $0x21c] sm:$0xff]
    %v1266 = vld [vmem:[%s11 + $0x224] sm:$0xff]
    %v1267 = vld [vmem:[%s11 + $0x22c] sm:$0xf]
    %v1268 = vld [vmem:[%s11 + $0x230] sm:$0xff]
    %v1269 = vld [vmem:[%s11 + $0x238] sm:$0xff]
    %v1270 = vld [vmem:[%s11 + $0x240] sm:$0xff]
    %v1271 = vld [vmem:[%s11 + $0x248] sm:$0xf]
    %v1272 = vld [vmem:[%s11 + $0x24c] sm:$0xff]
    %v1273 = vld [vmem:[%s11 + $0x254] sm:$0xff]
    %v1274 = vld [vmem:[%s11 + $0x25c] sm:$0xff]
    %v1275 = vld [vmem:[%s11 + $0x264] sm:$0xf]
    %v1276 = vld [vmem:[%s11 + $0x268] sm:$0xff]
    %v1277 = vld [vmem:[%s11 + $0x270] sm:$0xff]
    %v1278 = vld [vmem:[%s11 + $0x278] sm:$0xff]
    %v1279 = vld [vmem:[%s11 + $0x280] sm:$0xf]
    %v1280 = vld [vmem:[%s11 + $0x284] sm:$0xff]
    %v1281 = vld [vmem:[%s11 + $0x28c] sm:$0xff]
    %v1282 = vld [vmem:[%s11 + $0x294] sm:$0xff]
    %v1283 = vld [vmem:[%s11 + $0x29c] sm:$0xf]
    %v1284 = vld [vmem:[%s11 + $0x2a0] sm:$0xff]
    %v1285 = vld [vmem:[%s11 + $0x2a8] sm:$0xff]
    %v1286 = vld [vmem:[%s11 + $0x2b0] sm:$0xff]
    %v1287 = vld [vmem:[%s11 + $0x2b8] sm:$0xf]
    %v1288 = vld [vmem:[%s11 + $0x2bc] sm:$0xff]
    %v1289 = vld [vmem:[%s11 + $0x2c4] sm:$0xff]
    %v1290 = vld [vmem:[%s11 + $0x2cc] sm:$0xff]
    %v1291 = vld [vmem:[%s11 + $0x2d4] sm:$0xf]
    %v1292 = vld [vmem:[%s11 + $0x2d8] sm:$0xff]
    %v1293 = vld [vmem:[%s11 + $0x2e0] sm:$0xff]
    %v1294 = vld [vmem:[%s11 + $0x2e8] sm:$0xff]
    %v1295 = vld [vmem:[%s11 + $0x2f0] sm:$0xf]
    %v1296 = vld [vmem:[%s11 + $0x2f4] sm:$0xff]
    %v1297 = vld [vmem:[%s11 + $0x2fc] sm:$0xff]
    %v1298 = vld [vmem:[%s11 + $0x304] sm:$0xff]
    %v1299 = vld [vmem:[%s11 + $0x30c] sm:$0xf]
    %v1300 = vld [vmem:[%s11 + $0x310] sm:$0xff]
    %v1301 = vld [vmem:[%s11 + $0x318] sm:$0xff]
    %v1302 = vld [vmem:[%s11 + $0x320] sm:$0xff]
    %v1303 = vld [vmem:[%s11 + $0x328] sm:$0xf]
    %v1304 = vld [vmem:[%s11 + $0x32c] sm:$0xff]
    %v1305 = vld [vmem:[%s11 + $0x334] sm:$0xff]
    %v1306 = vld [vmem:[%s11 + $0x33c] sm:$0xff]
    %v1307 = vld [vmem:[%s11 + $0x344] sm:$0xf]
    %v1308 = vld [vmem:[%s11 + $0x348] sm:$0xff]
    %v1309 = vld [vmem:[%s11 + $0x350] sm:$0xff]
    %v1310 = vld [vmem:[%s11 + $0x358] sm:$0xff]
    %v1311 = vld [vmem:[%s11 + $0x360] sm:$0xf]
    %v1312 = vld [vmem:[%s11 + $0x364] sm:$0xff]
    %v1313 = vld [vmem:[%s11 + $0x36c] sm:$0xff]
    %v1314 = vld [vmem:[%s11 + $0x374] sm:$0xff]
    %v1315 = vld [vmem:[%s11 + $0x37c] sm:$0xf]
    %v1316 = vld [vmem:[%s12] sm:$0x7f]
    %v1318 = vperm.slane %v1316, 0
    %v1319 = vperm.slane %v1316, 1
    %v1320 = vperm.slane %v1316, 2
    %v1321 = vperm.slane %v1316, 3
    %v1322 = vperm.slane %v1316, 4
    %v1323 = vperm.slane %v1316, 5
    %v1324 = vperm.slane %v1316, 6
    %v1460 = vunpack.c.l.b16 %v1188
    %v1461 = vunpack.c.h.b16 %v1188
    %v1462 = vunpack.c.l.b16 %v1189
    %v1463 = vunpack.c.h.b16 %v1189
    %v1464 = vunpack.c.l.b16 %v1190
    %v1465 = vunpack.c.h.b16 %v1190
    %v1466 = vunpack.c.l.b16 %v1191
    %v1467 = vunpack.c.l.b16 %v1192
    %v1468 = vunpack.c.h.b16 %v1192
    %v1469 = vunpack.c.l.b16 %v1193
    %v1470 = vunpack.c.h.b16 %v1193
    %v1471 = vunpack.c.l.b16 %v1194
    %v1472 = vunpack.c.h.b16 %v1194
    %v1473 = vunpack.c.l.b16 %v1195
    %v1474 = vunpack.c.l.b16 %v1196
    %v1475 = vunpack.c.h.b16 %v1196
    %v1476 = vunpack.c.l.b16 %v1197
    %v1477 = vunpack.c.h.b16 %v1197
    %v1478 = vunpack.c.l.b16 %v1198
    %v1479 = vunpack.c.h.b16 %v1198
    %v1480 = vunpack.c.l.b16 %v1199
    %v1481 = vunpack.c.l.b16 %v1200
    %v1482 = vunpack.c.h.b16 %v1200
    %v1483 = vunpack.c.l.b16 %v1201
    %v1484 = vunpack.c.h.b16 %v1201
    %v1485 = vunpack.c.l.b16 %v1202
    %v1486 = vunpack.c.h.b16 %v1202
    %v1487 = vunpack.c.l.b16 %v1203
    %v1488 = vunpack.c.l.b16 %v1204
    %v1489 = vunpack.c.h.b16 %v1204
    %v1490 = vunpack.c.l.b16 %v1205
    %v1491 = vunpack.c.h.b16 %v1205
    %v1492 = vunpack.c.l.b16 %v1206
    %v1493 = vunpack.c.h.b16 %v1206
    %v1494 = vunpack.c.l.b16 %v1207
    %v1495 = vunpack.c.l.b16 %v1208
    %v1496 = vunpack.c.h.b16 %v1208
    %v1497 = vunpack.c.l.b16 %v1209
    %v1498 = vunpack.c.h.b16 %v1209
    %v1499 = vunpack.c.l.b16 %v1210
    %v1500 = vunpack.c.h.b16 %v1210
    %v1501 = vunpack.c.l.b16 %v1211
    %v1502 = vunpack.c.l.b16 %v1212
    %v1503 = vunpack.c.h.b16 %v1212
    %v1504 = vunpack.c.l.b16 %v1213
    %v1505 = vunpack.c.h.b16 %v1213
    %v1506 = vunpack.c.l.b16 %v1214
    %v1507 = vunpack.c.h.b16 %v1214
    %v1508 = vunpack.c.l.b16 %v1215
    %v1509 = vunpack.c.l.b16 %v1216
    %v1510 = vunpack.c.h.b16 %v1216
    %v1511 = vunpack.c.l.b16 %v1217
    %v1512 = vunpack.c.h.b16 %v1217
    %v1513 = vunpack.c.l.b16 %v1218
    %v1514 = vunpack.c.h.b16 %v1218
    %v1515 = vunpack.c.l.b16 %v1219
    %v1516 = vunpack.c.l.b16 %v1220
    %v1517 = vunpack.c.h.b16 %v1220
    %v1518 = vunpack.c.l.b16 %v1221
    %v1519 = vunpack.c.h.b16 %v1221
    %v1520 = vunpack.c.l.b16 %v1222
    %v1521 = vunpack.c.h.b16 %v1222
    %v1522 = vunpack.c.l.b16 %v1223
    %v1523 = vunpack.c.l.b16 %v1224
    %v1524 = vunpack.c.h.b16 %v1224
    %v1525 = vunpack.c.l.b16 %v1225
    %v1526 = vunpack.c.h.b16 %v1225
    %v1527 = vunpack.c.l.b16 %v1226
    %v1528 = vunpack.c.h.b16 %v1226
    %v1529 = vunpack.c.l.b16 %v1227
    %v1530 = vunpack.c.l.b16 %v1228
    %v1531 = vunpack.c.h.b16 %v1228
    %v1532 = vunpack.c.l.b16 %v1229
    %v1533 = vunpack.c.h.b16 %v1229
    %v1534 = vunpack.c.l.b16 %v1230
    %v1535 = vunpack.c.h.b16 %v1230
    %v1536 = vunpack.c.l.b16 %v1231
    %v1537 = vunpack.c.l.b16 %v1232
    %v1538 = vunpack.c.h.b16 %v1232
    %v1539 = vunpack.c.l.b16 %v1233
    %v1540 = vunpack.c.h.b16 %v1233
    %v1541 = vunpack.c.l.b16 %v1234
    %v1542 = vunpack.c.h.b16 %v1234
    %v1543 = vunpack.c.l.b16 %v1235
    %v1544 = vunpack.c.l.b16 %v1236
    %v1545 = vunpack.c.h.b16 %v1236
    %v1546 = vunpack.c.l.b16 %v1237
    %v1547 = vunpack.c.h.b16 %v1237
    %v1548 = vunpack.c.l.b16 %v1238
    %v1549 = vunpack.c.h.b16 %v1238
    %v1550 = vunpack.c.l.b16 %v1239
    %v1551 = vunpack.c.l.b16 %v1240
    %v1552 = vunpack.c.h.b16 %v1240
    %v1553 = vunpack.c.l.b16 %v1241
    %v1554 = vunpack.c.h.b16 %v1241
    %v1555 = vunpack.c.l.b16 %v1242
    %v1556 = vunpack.c.h.b16 %v1242
    %v1557 = vunpack.c.l.b16 %v1243
    %v1558 = vunpack.c.l.b16 %v1244
    %v1559 = vunpack.c.h.b16 %v1244
    %v1560 = vunpack.c.l.b16 %v1245
    %v1561 = vunpack.c.h.b16 %v1245
    %v1562 = vunpack.c.l.b16 %v1246
    %v1563 = vunpack.c.h.b16 %v1246
    %v1564 = vunpack.c.l.b16 %v1247
    %v1565 = vunpack.c.l.b16 %v1248
    %v1566 = vunpack.c.h.b16 %v1248
    %v1567 = vunpack.c.l.b16 %v1249
    %v1568 = vunpack.c.h.b16 %v1249
    %v1569 = vunpack.c.l.b16 %v1250
    %v1570 = vunpack.c.h.b16 %v1250
    %v1571 = vunpack.c.l.b16 %v1251
    %v1572 = vunpack.c.l.b16 %v1252
    %v1573 = vunpack.c.h.b16 %v1252
    %v1574 = vunpack.c.l.b16 %v1253
    %v1575 = vunpack.c.h.b16 %v1253
    %v1576 = vunpack.c.l.b16 %v1254
    %v1577 = vunpack.c.h.b16 %v1254
    %v1578 = vunpack.c.l.b16 %v1255
    %v1579 = vunpack.c.l.b16 %v1256
    %v1580 = vunpack.c.h.b16 %v1256
    %v1581 = vunpack.c.l.b16 %v1257
    %v1582 = vunpack.c.h.b16 %v1257
    %v1583 = vunpack.c.l.b16 %v1258
    %v1584 = vunpack.c.h.b16 %v1258
    %v1585 = vunpack.c.l.b16 %v1259
    %v1586 = vunpack.c.l.b16 %v1260
    %v1587 = vunpack.c.h.b16 %v1260
    %v1588 = vunpack.c.l.b16 %v1261
    %v1589 = vunpack.c.h.b16 %v1261
    %v1590 = vunpack.c.l.b16 %v1262
    %v1591 = vunpack.c.h.b16 %v1262
    %v1592 = vunpack.c.l.b16 %v1263
    %v1593 = vunpack.c.l.b16 %v1264
    %v1594 = vunpack.c.h.b16 %v1264
    %v1595 = vunpack.c.l.b16 %v1265
    %v1596 = vunpack.c.h.b16 %v1265
    %v1597 = vunpack.c.l.b16 %v1266
    %v1598 = vunpack.c.h.b16 %v1266
    %v1599 = vunpack.c.l.b16 %v1267
    %v1600 = vunpack.c.l.b16 %v1268
    %v1601 = vunpack.c.h.b16 %v1268
    %v1602 = vunpack.c.l.b16 %v1269
    %v1603 = vunpack.c.h.b16 %v1269
    %v1604 = vunpack.c.l.b16 %v1270
    %v1605 = vunpack.c.h.b16 %v1270
    %v1606 = vunpack.c.l.b16 %v1271
    %v1607 = vunpack.c.l.b16 %v1272
    %v1608 = vunpack.c.h.b16 %v1272
    %v1609 = vunpack.c.l.b16 %v1273
    %v1610 = vunpack.c.h.b16 %v1273
    %v1611 = vunpack.c.l.b16 %v1274
    %v1612 = vunpack.c.h.b16 %v1274
    %v1613 = vunpack.c.l.b16 %v1275
    %v1614 = vunpack.c.l.b16 %v1276
    %v1615 = vunpack.c.h.b16 %v1276
    %v1616 = vunpack.c.l.b16 %v1277
    %v1617 = vunpack.c.h.b16 %v1277
    %v1618 = vunpack.c.l.b16 %v1278
    %v1619 = vunpack.c.h.b16 %v1278
    %v1620 = vunpack.c.l.b16 %v1279
    %v1621 = vunpack.c.l.b16 %v1280
    %v1622 = vunpack.c.h.b16 %v1280
    %v1623 = vunpack.c.l.b16 %v1281
    %v1624 = vunpack.c.h.b16 %v1281
    %v1625 = vunpack.c.l.b16 %v1282
    %v1626 = vunpack.c.h.b16 %v1282
    %v1627 = vunpack.c.l.b16 %v1283
    %v1628 = vunpack.c.l.b16 %v1284
    %v1629 = vunpack.c.h.b16 %v1284
    %v1630 = vunpack.c.l.b16 %v1285
    %v1631 = vunpack.c.h.b16 %v1285
    %v1632 = vunpack.c.l.b16 %v1286
    %v1633 = vunpack.c.h.b16 %v1286
    %v1634 = vunpack.c.l.b16 %v1287
    %v1635 = vunpack.c.l.b16 %v1288
    %v1636 = vunpack.c.h.b16 %v1288
    %v1637 = vunpack.c.l.b16 %v1289
    %v1638 = vunpack.c.h.b16 %v1289
    %v1639 = vunpack.c.l.b16 %v1290
    %v1640 = vunpack.c.h.b16 %v1290
    %v1641 = vunpack.c.l.b16 %v1291
    %v1642 = vunpack.c.l.b16 %v1292
    %v1643 = vunpack.c.h.b16 %v1292
    %v1644 = vunpack.c.l.b16 %v1293
    %v1645 = vunpack.c.h.b16 %v1293
    %v1646 = vunpack.c.l.b16 %v1294
    %v1647 = vunpack.c.h.b16 %v1294
    %v1648 = vunpack.c.l.b16 %v1295
    %v1649 = vunpack.c.l.b16 %v1296
    %v1650 = vunpack.c.h.b16 %v1296
    %v1651 = vunpack.c.l.b16 %v1297
    %v1652 = vunpack.c.h.b16 %v1297
    %v1653 = vunpack.c.l.b16 %v1298
    %v1654 = vunpack.c.h.b16 %v1298
    %v1655 = vunpack.c.l.b16 %v1299
    %v1656 = vunpack.c.l.b16 %v1300
    %v1657 = vunpack.c.h.b16 %v1300
    %v1658 = vunpack.c.l.b16 %v1301
    %v1659 = vunpack.c.h.b16 %v1301
    %v1660 = vunpack.c.l.b16 %v1302
    %v1661 = vunpack.c.h.b16 %v1302
    %v1662 = vunpack.c.l.b16 %v1303
    %v1663 = vunpack.c.l.b16 %v1304
    %v1664 = vunpack.c.h.b16 %v1304
    %v1665 = vunpack.c.l.b16 %v1305
    %v1666 = vunpack.c.h.b16 %v1305
    %v1667 = vunpack.c.l.b16 %v1306
    %v1668 = vunpack.c.h.b16 %v1306
    %v1669 = vunpack.c.l.b16 %v1307
    %v1670 = vunpack.c.l.b16 %v1308
    %v1671 = vunpack.c.h.b16 %v1308
    %v1672 = vunpack.c.l.b16 %v1309
    %v1673 = vunpack.c.h.b16 %v1309
    %v1674 = vunpack.c.l.b16 %v1310
    %v1675 = vunpack.c.h.b16 %v1310
    %v1676 = vunpack.c.l.b16 %v1311
    %v1677 = vunpack.c.l.b16 %v1312
    %v1678 = vunpack.c.h.b16 %v1312
    %v1679 = vunpack.c.l.b16 %v1313
    %v1680 = vunpack.c.h.b16 %v1313
    %v1681 = vunpack.c.l.b16 %v1314
    %v1682 = vunpack.c.h.b16 %v1314
    %v1683 = vunpack.c.l.b16 %v1315
    %v1684 = vpack.c.b16 %v1467, %v1460
    %v1685 = vpack.c.b16 %v1468, %v1461
    %v1686 = vpack.c.b16 %v1469, %v1462
    %v1687 = vpack.c.b16 %v1470, %v1463
    %v1688 = vpack.c.b16 %v1471, %v1464
    %v1689 = vpack.c.b16 %v1472, %v1465
    %v1690 = vpack.c.b16 %v1473, %v1466
    %v1691 = vpack.c.b16 %v1481, %v1474
    %v1692 = vpack.c.b16 %v1482, %v1475
    %v1693 = vpack.c.b16 %v1483, %v1476
    %v1694 = vpack.c.b16 %v1484, %v1477
    %v1695 = vpack.c.b16 %v1485, %v1478
    %v1696 = vpack.c.b16 %v1486, %v1479
    %v1697 = vpack.c.b16 %v1487, %v1480
    %v1698 = vpack.c.b16 %v1495, %v1488
    %v1699 = vpack.c.b16 %v1496, %v1489
    %v1700 = vpack.c.b16 %v1497, %v1490
    %v1701 = vpack.c.b16 %v1498, %v1491
    %v1702 = vpack.c.b16 %v1499, %v1492
    %v1703 = vpack.c.b16 %v1500, %v1493
    %v1704 = vpack.c.b16 %v1501, %v1494
    %v1705 = vpack.c.b16 %v1509, %v1502
    %v1706 = vpack.c.b16 %v1510, %v1503
    %v1707 = vpack.c.b16 %v1511, %v1504
    %v1708 = vpack.c.b16 %v1512, %v1505
    %v1709 = vpack.c.b16 %v1513, %v1506
    %v1710 = vpack.c.b16 %v1514, %v1507
    %v1711 = vpack.c.b16 %v1515, %v1508
    %v1712 = vpack.c.b16 %v1523, %v1516
    %v1713 = vpack.c.b16 %v1524, %v1517
    %v1714 = vpack.c.b16 %v1525, %v1518
    %v1715 = vpack.c.b16 %v1526, %v1519
    %v1716 = vpack.c.b16 %v1527, %v1520
    %v1717 = vpack.c.b16 %v1528, %v1521
    %v1718 = vpack.c.b16 %v1529, %v1522
    %v1719 = vpack.c.b16 %v1537, %v1530
    %v1720 = vpack.c.b16 %v1538, %v1531
    %v1721 = vpack.c.b16 %v1539, %v1532
    %v1722 = vpack.c.b16 %v1540, %v1533
    %v1723 = vpack.c.b16 %v1541, %v1534
    %v1724 = vpack.c.b16 %v1542, %v1535
    %v1725 = vpack.c.b16 %v1543, %v1536
    %v1726 = vpack.c.b16 %v1551, %v1544
    %v1727 = vpack.c.b16 %v1552, %v1545
    %v1728 = vpack.c.b16 %v1553, %v1546
    %v1729 = vpack.c.b16 %v1554, %v1547
    %v1730 = vpack.c.b16 %v1555, %v1548
    %v1731 = vpack.c.b16 %v1556, %v1549
    %v1732 = vpack.c.b16 %v1557, %v1550
    %v1733 = vpack.c.b16 %v1565, %v1558
    %v1734 = vpack.c.b16 %v1566, %v1559
    %v1735 = vpack.c.b16 %v1567, %v1560
    %v1736 = vpack.c.b16 %v1568, %v1561
    %v1737 = vpack.c.b16 %v1569, %v1562
    %v1738 = vpack.c.b16 %v1570, %v1563
    %v1739 = vpack.c.b16 %v1571, %v1564
    %v1740 = vpack.c.b16 %v1579, %v1572
    %v1741 = vpack.c.b16 %v1580, %v1573
    %v1742 = vpack.c.b16 %v1581, %v1574
    %v1743 = vpack.c.b16 %v1582, %v1575
    %v1744 = vpack.c.b16 %v1583, %v1576
    %v1745 = vpack.c.b16 %v1584, %v1577
    %v1746 = vpack.c.b16 %v1585, %v1578
    %v1747 = vpack.c.b16 %v1593, %v1586
    %v1748 = vpack.c.b16 %v1594, %v1587
    %v1749 = vpack.c.b16 %v1595, %v1588
    %v1750 = vpack.c.b16 %v1596, %v1589
    %v1751 = vpack.c.b16 %v1597, %v1590
    %v1752 = vpack.c.b16 %v1598, %v1591
    %v1753 = vpack.c.b16 %v1599, %v1592
    %v1754 = vpack.c.b16 %v1607, %v1600
    %v1755 = vpack.c.b16 %v1608, %v1601
    %v1756 = vpack.c.b16 %v1609, %v1602
    %v1757 = vpack.c.b16 %v1610, %v1603
    %v1758 = vpack.c.b16 %v1611, %v1604
    %v1759 = vpack.c.b16 %v1612, %v1605
    %v1760 = vpack.c.b16 %v1613, %v1606
    %v1761 = vpack.c.b16 %v1621, %v1614
    %v1762 = vpack.c.b16 %v1622, %v1615
    %v1763 = vpack.c.b16 %v1623, %v1616
    %v1764 = vpack.c.b16 %v1624, %v1617
    %v1765 = vpack.c.b16 %v1625, %v1618
    %v1766 = vpack.c.b16 %v1626, %v1619
    %v1767 = vpack.c.b16 %v1627, %v1620
    %v1768 = vpack.c.b16 %v1635, %v1628
    %v1769 = vpack.c.b16 %v1636, %v1629
    %v1770 = vpack.c.b16 %v1637, %v1630
    %v1771 = vpack.c.b16 %v1638, %v1631
    %v1772 = vpack.c.b16 %v1639, %v1632
    %v1773 = vpack.c.b16 %v1640, %v1633
    %v1774 = vpack.c.b16 %v1641, %v1634
    %v1775 = vpack.c.b16 %v1649, %v1642
    %v1776 = vpack.c.b16 %v1650, %v1643
    %v1777 = vpack.c.b16 %v1651, %v1644
    %v1778 = vpack.c.b16 %v1652, %v1645
    %v1779 = vpack.c.b16 %v1653, %v1646
    %v1780 = vpack.c.b16 %v1654, %v1647
    %v1781 = vpack.c.b16 %v1655, %v1648
    %v1782 = vpack.c.b16 %v1663, %v1656
    %v1783 = vpack.c.b16 %v1664, %v1657
    %v1784 = vpack.c.b16 %v1665, %v1658
    %v1785 = vpack.c.b16 %v1666, %v1659
    %v1786 = vpack.c.b16 %v1667, %v1660
    %v1787 = vpack.c.b16 %v1668, %v1661
    %v1788 = vpack.c.b16 %v1669, %v1662
    %v1789 = vpack.c.b16 %v1677, %v1670
    %v1790 = vpack.c.b16 %v1678, %v1671
    %v1791 = vpack.c.b16 %v1679, %v1672
    %v1792 = vpack.c.b16 %v1680, %v1673
    %v1793 = vpack.c.b16 %v1681, %v1674
    %v1794 = vpack.c.b16 %v1682, %v1675
    %v1795 = vpack.c.b16 %v1683, %v1676
    %1908 = vmatpush.bf16.msra.mxu0 %v1733
    %1909 = vmatpush.bf16.msra.mxu0 %v1726
    %1910 = vmatpush.bf16.msra.mxu0 %v1719
    %1911 = vmatpush.bf16.msra.mxu0 %v1712
    %1912 = vmatpush.bf16.msra.mxu0 %v1705
    %1913 = vmatpush.bf16.msra.mxu0 %v1698
    %1914 = vmatpush.bf16.msra.mxu0 %v1691
    %1915 = vmatpush.bf16.msra.mxu0 %v1684
    %1916 = vmatmul.bf16.gmra.mxu0 %v1186
    %v1917 = vpop.f32.mrf.mxu0
    %v1918 = vadd.f32 %v1318, %v1917
    %v1919 = vpop.f32.mrf.mxu0
    %1920 = vdwg.mxu0
    %1921 = vmatpush.bf16.msra.mxu0 %v1789
    %1922 = vmatpush.bf16.msra.mxu0 %v1782
    %1923 = vmatpush.bf16.msra.mxu0 %v1775
    %1924 = vmatpush.bf16.msra.mxu0 %v1768
    %1925 = vmatpush.bf16.msra.mxu0 %v1761
    %1926 = vmatpush.bf16.msra.mxu0 %v1754
    %1927 = vmatpush.bf16.msra.mxu0 %v1747
    %1928 = vmatpush.bf16.msra.mxu0 %v1740
    %1929 = vmatmul.bf16.gmra.mxu0 %v1187
    %v1930 = vpop.f32.mrf.mxu0
    %v1931 = vadd.f32 %v1918, %v1930
    %v1932 = vpop.f32.mrf.mxu0
    %1933 = vdwg.mxu0
    %1934 = vmatpush.bf16.msra.mxu0 %v1734
    %1935 = vmatpush.bf16.msra.mxu0 %v1727
    %1936 = vmatpush.bf16.msra.mxu0 %v1720
    %1937 = vmatpush.bf16.msra.mxu0 %v1713
    %1938 = vmatpush.bf16.msra.mxu0 %v1706
    %1939 = vmatpush.bf16.msra.mxu0 %v1699
    %1940 = vmatpush.bf16.msra.mxu0 %v1692
    %1941 = vmatpush.bf16.msra.mxu0 %v1685
    %1942 = vmatmul.bf16.gmra.mxu0 %v1186
    %v1943 = vpop.f32.mrf.mxu0
    %v1944 = vadd.f32 %v1319, %v1943
    %v1945 = vpop.f32.mrf.mxu0
    %1946 = vdwg.mxu0
    %1947 = vmatpush.bf16.msra.mxu0 %v1790
    %1948 = vmatpush.bf16.msra.mxu0 %v1783
    %1949 = vmatpush.bf16.msra.mxu0 %v1776
    %1950 = vmatpush.bf16.msra.mxu0 %v1769
    %1951 = vmatpush.bf16.msra.mxu0 %v1762
    %1952 = vmatpush.bf16.msra.mxu0 %v1755
    %1953 = vmatpush.bf16.msra.mxu0 %v1748
    %1954 = vmatpush.bf16.msra.mxu0 %v1741
    %1955 = vmatmul.bf16.gmra.mxu0 %v1187
    %v1956 = vpop.f32.mrf.mxu0
    %v1957 = vadd.f32 %v1944, %v1956
    %v1958 = vpop.f32.mrf.mxu0
    %1959 = vdwg.mxu0
    %1960 = vmatpush.bf16.msra.mxu0 %v1735
    %1961 = vmatpush.bf16.msra.mxu0 %v1728
    %1962 = vmatpush.bf16.msra.mxu0 %v1721
    %1963 = vmatpush.bf16.msra.mxu0 %v1714
    %1964 = vmatpush.bf16.msra.mxu0 %v1707
    %1965 = vmatpush.bf16.msra.mxu0 %v1700
    %1966 = vmatpush.bf16.msra.mxu0 %v1693
    %1967 = vmatpush.bf16.msra.mxu0 %v1686
    %1968 = vmatmul.bf16.gmra.mxu0 %v1186
    %v1969 = vpop.f32.mrf.mxu0
    %v1970 = vadd.f32 %v1320, %v1969
    %v1971 = vpop.f32.mrf.mxu0
    %1972 = vdwg.mxu0
    %1973 = vmatpush.bf16.msra.mxu0 %v1791
    %1974 = vmatpush.bf16.msra.mxu0 %v1784
    %1975 = vmatpush.bf16.msra.mxu0 %v1777
    %1976 = vmatpush.bf16.msra.mxu0 %v1770
    %1977 = vmatpush.bf16.msra.mxu0 %v1763
    %1978 = vmatpush.bf16.msra.mxu0 %v1756
    %1979 = vmatpush.bf16.msra.mxu0 %v1749
    %1980 = vmatpush.bf16.msra.mxu0 %v1742
    %1981 = vmatmul.bf16.gmra.mxu0 %v1187
    %v1982 = vpop.f32.mrf.mxu0
    %v1983 = vadd.f32 %v1970, %v1982
    %v1984 = vpop.f32.mrf.mxu0
    %1985 = vdwg.mxu0
    %1986 = vmatpush.bf16.msra.mxu0 %v1736
    %1987 = vmatpush.bf16.msra.mxu0 %v1729
    %1988 = vmatpush.bf16.msra.mxu0 %v1722
    %1989 = vmatpush.bf16.msra.mxu0 %v1715
    %1990 = vmatpush.bf16.msra.mxu0 %v1708
    %1991 = vmatpush.bf16.msra.mxu0 %v1701
    %1992 = vmatpush.bf16.msra.mxu0 %v1694
    %1993 = vmatpush.bf16.msra.mxu0 %v1687
    %1994 = vmatmul.bf16.gmra.mxu0 %v1186
    %v1995 = vpop.f32.mrf.mxu0
    %v1996 = vadd.f32 %v1321, %v1995
    %v1997 = vpop.f32.mrf.mxu0
    %1998 = vdwg.mxu0
    %1999 = vmatpush.bf16.msra.mxu0 %v1792
    %2000 = vmatpush.bf16.msra.mxu0 %v1785
    %2001 = vmatpush.bf16.msra.mxu0 %v1778
    %2002 = vmatpush.bf16.msra.mxu0 %v1771
    %2003 = vmatpush.bf16.msra.mxu0 %v1764
    %2004 = vmatpush.bf16.msra.mxu0 %v1757
    %2005 = vmatpush.bf16.msra.mxu0 %v1750
    %2006 = vmatpush.bf16.msra.mxu0 %v1743
    %2007 = vmatmul.bf16.gmra.mxu0 %v1187
    %v2008 = vpop.f32.mrf.mxu0
    %v2009 = vadd.f32 %v1996, %v2008
    %v2010 = vpop.f32.mrf.mxu0
    %2011 = vdwg.mxu0
    %2012 = vmatpush.bf16.msra.mxu0 %v1737
    %2013 = vmatpush.bf16.msra.mxu0 %v1730
    %2014 = vmatpush.bf16.msra.mxu0 %v1723
    %2015 = vmatpush.bf16.msra.mxu0 %v1716
    %2016 = vmatpush.bf16.msra.mxu0 %v1709
    %2017 = vmatpush.bf16.msra.mxu0 %v1702
    %2018 = vmatpush.bf16.msra.mxu0 %v1695
    %2019 = vmatpush.bf16.msra.mxu0 %v1688
    %2020 = vmatmul.bf16.gmra.mxu0 %v1186
    %v2021 = vpop.f32.mrf.mxu0
    %v2022 = vadd.f32 %v1322, %v2021
    %v2023 = vpop.f32.mrf.mxu0
    %2024 = vdwg.mxu0
    %2025 = vmatpush.bf16.msra.mxu0 %v1793
    %2026 = vmatpush.bf16.msra.mxu0 %v1786
    %2027 = vmatpush.bf16.msra.mxu0 %v1779
    %2028 = vmatpush.bf16.msra.mxu0 %v1772
    %2029 = vmatpush.bf16.msra.mxu0 %v1765
    %2030 = vmatpush.bf16.msra.mxu0 %v1758
    %2031 = vmatpush.bf16.msra.mxu0 %v1751
    %2032 = vmatpush.bf16.msra.mxu0 %v1744
    %2033 = vmatmul.bf16.gmra.mxu0 %v1187
    %v2034 = vpop.f32.mrf.mxu0
    %v2035 = vadd.f32 %v2022, %v2034
    %v2036 = vpop.f32.mrf.mxu0
    %2037 = vdwg.mxu0
    %2038 = vmatpush.bf16.msra.mxu0 %v1738
    %2039 = vmatpush.bf16.msra.mxu0 %v1731
    %2040 = vmatpush.bf16.msra.mxu0 %v1724
    %2041 = vmatpush.bf16.msra.mxu0 %v1717
    %2042 = vmatpush.bf16.msra.mxu0 %v1710
    %2043 = vmatpush.bf16.msra.mxu0 %v1703
    %2044 = vmatpush.bf16.msra.mxu0 %v1696
    %2045 = vmatpush.bf16.msra.mxu0 %v1689
    %2046 = vmatmul.bf16.gmra.mxu0 %v1186
    %v2047 = vpop.f32.mrf.mxu0
    %v2048 = vadd.f32 %v1323, %v2047
    %v2049 = vpop.f32.mrf.mxu0
    %2050 = vdwg.mxu0
    %2051 = vmatpush.bf16.msra.mxu0 %v1794
    %2052 = vmatpush.bf16.msra.mxu0 %v1787
    %2053 = vmatpush.bf16.msra.mxu0 %v1780
    %2054 = vmatpush.bf16.msra.mxu0 %v1773
    %2055 = vmatpush.bf16.msra.mxu0 %v1766
    %2056 = vmatpush.bf16.msra.mxu0 %v1759
    %2057 = vmatpush.bf16.msra.mxu0 %v1752
    %2058 = vmatpush.bf16.msra.mxu0 %v1745
    %2059 = vmatmul.bf16.gmra.mxu0 %v1187
    %v2060 = vpop.f32.mrf.mxu0
    %v2061 = vadd.f32 %v2048, %v2060
    %v2062 = vpop.f32.mrf.mxu0
    %2063 = vdwg.mxu0
    %2064 = vmatpush.bf16.msra.mxu0 %v1739
    %2065 = vmatpush.bf16.msra.mxu0 %v1732
    %2066 = vmatpush.bf16.msra.mxu0 %v1725
    %2067 = vmatpush.bf16.msra.mxu0 %v1718
    %2068 = vmatpush.bf16.msra.mxu0 %v1711
    %2069 = vmatpush.bf16.msra.mxu0 %v1704
    %2070 = vmatpush.bf16.msra.mxu0 %v1697
    %2071 = vmatpush.bf16.msra.mxu0 %v1690
    %2072 = vmatmul.bf16.gmra.mxu0 %v1186
    %v2073 = vpop.f32.mrf.mxu0
    %v2074 = vadd.f32 %v1324, %v2073
    %v2075 = vpop.f32.mrf.mxu0
    %2076 = vdwg.mxu0
    %2077 = vmatpush.bf16.msra.mxu0 %v1795
    %2078 = vmatpush.bf16.msra.mxu0 %v1788
    %2079 = vmatpush.bf16.msra.mxu0 %v1781
    %2080 = vmatpush.bf16.msra.mxu0 %v1774
    %2081 = vmatpush.bf16.msra.mxu0 %v1767
    %2082 = vmatpush.bf16.msra.mxu0 %v1760
    %2083 = vmatpush.bf16.msra.mxu0 %v1753
    %2084 = vmatpush.bf16.msra.mxu0 %v1746
    %2085 = vmatmul.bf16.gmra.mxu0 %v1187
    %v2086 = vpop.f32.mrf.mxu0
    %v2087 = vadd.f32 %v2074, %v2086
    %v2088 = vpop.f32.mrf.mxu0
    %2089 = vdwg.mxu0
    %v2090 = vxor.u32 %v1931, 2147483648
    %v2091 = vxor.u32 %v1957, 2147483648
    %v2092 = vxor.u32 %v1983, 2147483648
    %v2093 = vxor.u32 %v2009, 2147483648
    %v2094 = vxor.u32 %v2035, 2147483648
    %v2095 = vxor.u32 %v2061, 2147483648
    %v2096 = vxor.u32 %v2087, 2147483648
    %v2097 = vmul.f32 %v2090, 1.442695
    %v2098 = vpow.pop %v2097
    %v2099 = vmul.f32 %v2091, 1.442695
    %v2100 = vpow.pop %v2099
    %v2101 = vmul.f32 %v2092, 1.442695
    %v2102 = vpow.pop %v2101
    %v2103 = vmul.f32 %v2093, 1.442695
    %v2104 = vpow.pop %v2103
    %v2105 = vmul.f32 %v2094, 1.442695
    %v2106 = vpow.pop %v2105
    %v2107 = vmul.f32 %v2095, 1.442695
    %v2108 = vpow.pop %v2107
    %v2109 = vmul.f32 %v2096, 1.442695
    %v2110 = vpow.pop %v2109
    %v2111 = vadd.f32 %v2098, 1.0
    %v2112 = vadd.f32 %v2100, 1.0
    %v2113 = vadd.f32 %v2102, 1.0
    %v2114 = vadd.f32 %v2104, 1.0
    %v2115 = vadd.f32 %v2106, 1.0
    %v2116 = vadd.f32 %v2108, 1.0
    %v2117 = vadd.f32 %v2110, 1.0
    %v2118 = vrcp.pop %v2111
    %v2119 = vmul.f32 %v2111, %v2118
    %v2120 = vsub.f32 1.0, %v2119
    %v2121 = vmul.f32 %v2118, %v2120
    %v2122 = vadd.f32 %v2118, %v2121
    %vm2123 = vweird.f32 %v2111
    %vm2124 = vweird.f32 %v2118
    %vm2125 = vmor %vm2123, %vm2124
    %v2126 = vsel %vm2125, %v2118, %v2122
    %v2127 = vand.u32 2147483647, %v2111
    %vm2128 = vcmp.eq.f32.partialorder %v2127, 8.507059e+37
    %v2129 = vand.u32 %v2111, 2147483648
    %v2130 = vor.u32 1.1754944e-38, %v2129
    %v2131 = vsel %vm2128, %v2130, %v2126
    %v2132 = vmul.f32 1.0, %v2131
    %v2133 = vrcp.pop %v2112
    %v2134 = vmul.f32 %v2112, %v2133
    %v2135 = vsub.f32 1.0, %v2134
    %v2136 = vmul.f32 %v2133, %v2135
    %v2137 = vadd.f32 %v2133, %v2136
    %vm2138 = vweird.f32 %v2112
    %vm2139 = vweird.f32 %v2133
    %vm2140 = vmor %vm2138, %vm2139
    %v2141 = vsel %vm2140, %v2133, %v2137
    %v2142 = vand.u32 2147483647, %v2112
    %vm2143 = vcmp.eq.f32.partialorder %v2142, 8.507059e+37
    %v2144 = vand.u32 %v2112, 2147483648
    %v2145 = vor.u32 1.1754944e-38, %v2144
    %v2146 = vsel %vm2143, %v2145, %v2141
    %v2147 = vmul.f32 1.0, %v2146
    %v2148 = vrcp.pop %v2113
    %v2149 = vmul.f32 %v2113, %v2148
    %v2150 = vsub.f32 1.0, %v2149
    %v2151 = vmul.f32 %v2148, %v2150
    %v2152 = vadd.f32 %v2148, %v2151
    %vm2153 = vweird.f32 %v2113
    %vm2154 = vweird.f32 %v2148
    %vm2155 = vmor %vm2153, %vm2154
    %v2156 = vsel %vm2155, %v2148, %v2152
    %v2157 = vand.u32 2147483647, %v2113
    %vm2158 = vcmp.eq.f32.partialorder %v2157, 8.507059e+37
    %v2159 = vand.u32 %v2113, 2147483648
    %v2160 = vor.u32 1.1754944e-38, %v2159
    %v2161 = vsel %vm2158, %v2160, %v2156
    %v2162 = vmul.f32 1.0, %v2161
    %v2163 = vrcp.pop %v2114
    %v2164 = vmul.f32 %v2114, %v2163
    %v2165 = vsub.f32 1.0, %v2164
    %v2166 = vmul.f32 %v2163, %v2165
    %v2167 = vadd.f32 %v2163, %v2166
    %vm2168 = vweird.f32 %v2114
    %vm2169 = vweird.f32 %v2163
    %vm2170 = vmor %vm2168, %vm2169
    %v2171 = vsel %vm2170, %v2163, %v2167
    %v2172 = vand.u32 2147483647, %v2114
    %vm2173 = vcmp.eq.f32.partialorder %v2172, 8.507059e+37
    %v2174 = vand.u32 %v2114, 2147483648
    %v2175 = vor.u32 1.1754944e-38, %v2174
    %v2176 = vsel %vm2173, %v2175, %v2171
    %v2177 = vmul.f32 1.0, %v2176
    %v2178 = vrcp.pop %v2115
    %v2179 = vmul.f32 %v2115, %v2178
    %v2180 = vsub.f32 1.0, %v2179
    %v2181 = vmul.f32 %v2178, %v2180
    %v2182 = vadd.f32 %v2178, %v2181
    %vm2183 = vweird.f32 %v2115
    %vm2184 = vweird.f32 %v2178
    %vm2185 = vmor %vm2183, %vm2184
    %v2186 = vsel %vm2185, %v2178, %v2182
    %v2187 = vand.u32 2147483647, %v2115
    %vm2188 = vcmp.eq.f32.partialorder %v2187, 8.507059e+37
    %v2189 = vand.u32 %v2115, 2147483648
    %v2190 = vor.u32 1.1754944e-38, %v2189
    %v2191 = vsel %vm2188, %v2190, %v2186
    %v2192 = vmul.f32 1.0, %v2191
    %v2193 = vrcp.pop %v2116
    %v2194 = vmul.f32 %v2116, %v2193
    %v2195 = vsub.f32 1.0, %v2194
    %v2196 = vmul.f32 %v2193, %v2195
    %v2197 = vadd.f32 %v2193, %v2196
    %vm2198 = vweird.f32 %v2116
    %vm2199 = vweird.f32 %v2193
    %vm2200 = vmor %vm2198, %vm2199
    %v2201 = vsel %vm2200, %v2193, %v2197
    %v2202 = vand.u32 2147483647, %v2116
    %vm2203 = vcmp.eq.f32.partialorder %v2202, 8.507059e+37
    %v2204 = vand.u32 %v2116, 2147483648
    %v2205 = vor.u32 1.1754944e-38, %v2204
    %v2206 = vsel %vm2203, %v2205, %v2201
    %v2207 = vmul.f32 1.0, %v2206
    %v2208 = vrcp.pop %v2117
    %v2209 = vmul.f32 %v2117, %v2208
    %v2210 = vsub.f32 1.0, %v2209
    %v2211 = vmul.f32 %v2208, %v2210
    %v2212 = vadd.f32 %v2208, %v2211
    %vm2213 = vweird.f32 %v2117
    %vm2214 = vweird.f32 %v2208
    %vm2215 = vmor %vm2213, %vm2214
    %v2216 = vsel %vm2215, %v2208, %v2212
    %v2217 = vand.u32 2147483647, %v2117
    %vm2218 = vcmp.eq.f32.partialorder %v2217, 8.507059e+37
    %v2219 = vand.u32 %v2117, 2147483648
    %v2220 = vor.u32 1.1754944e-38, %v2219
    %v2221 = vsel %vm2218, %v2220, %v2216
    %v2222 = vmul.f32 1.0, %v2221
    %v2223 = vpack.c.bf16 %v2147, %v2132
    %v2224 = vpack.c.bf16 %v2177, %v2162
    %v2225 = vpack.c.bf16 %v2207, %v2192
    %v2226 = vpack.c.bf16 %v2222, %v2222
    %2227 = vst [vmem:[#allocation2] sm:$0xff] %v2223
    %2228 = vst [vmem:[#allocation2 + $0x8] sm:$0xff] %v2224
    %2229 = vst [vmem:[#allocation2 + $0x10] sm:$0xff] %v2225
    %vm2230 = vcmask 125952
    %2231 = vst.msk [vmem:[#allocation2 + $0x18] sm:$0xf] %vm2230, %v2226
    // Predicated region
    $region54: #{autoencoder_forward.1} parent=1 // pred_check
      _
    $region55: #{autoencoder_forward.1} parent=1 // pred_check_branch
      %2233 = sbr.rel (0) target = $region57
    $region56: #{autoencoder_forward.1} parent=1 // pred_region
      %2235 = vsyncadd [#allocation3], 0
      %s2237 = sshll.u32 [#allocation2], 4
      %s2238 = int_to_ptr.vmem [resolvable:$true] %s2237
      %s2239 = sshll.u32 %s13, 4
      %s2240 = int_to_ptr.hbm [resolvable:$true] %s2239
      %2242 = dma.vmem_to_hbm [thread:$0]  %s2238, 448, %s2240, [#allocation3]
    $region57: #{autoencoder_forward.1} parent=1 // pred_fallthru
      _
    // Predicated region
    $region58: #{autoencoder_forward.1} parent=1 // pred_check
      _
    $region59: #{autoencoder_forward.1} parent=1 // pred_check_branch
      %2244 = sbr.rel (0) target = $region61
    $region60: #{autoencoder_forward.1} parent=1 // pred_region
      %2246 = dma.done [#allocation3], 448
    $region61: #{autoencoder_forward.1} parent=1 // pred_fallthru
      _
    %2247 = vsyncpa [#allocation3], 1

</llo_original>
